<compile_context>
chip_gen: v6e
topology: v6e:2x2x1
jax: 0.10.0
libtpu: 0.0.40
codegen_flags: <defaults>
</compile_context>

<pallas_src>
from functools import partial

import jax
import jax.numpy as jnp
from jax.experimental import pallas as pl
from jax.experimental.pallas import tpu as pltpu  # noqa: F401  (TPU backend)


def _dual_head_kernel(x_ref, wfc_ref, bfc_ref, wcls_ref, bcls_ref, out_ref):
    """Fused head: (x @ Wfc_T + b_fc) -> ReLU -> @ Wcls_T + b_cls (lane-padded)."""
    # fc: bf16 x bf16 -> f32 accumulate on the MXU.
    h = jnp.dot(x_ref[...], wfc_ref[...], preferred_element_type=jnp.float32)
    h = jnp.maximum(h + bfc_ref[...], 0.0)                       # bias + ReLU
    # classifier (output lane-padded to a multiple of 128 -> unmasked store)
    out_ref[...] = (
        jnp.dot(h.astype(jnp.bfloat16), wcls_ref[...],
                preferred_element_type=jnp.float32)
        + bcls_ref[...]
    )


@partial(jax.jit, static_argnames=("num_classes",))
def _dual_head_forward(char_feat_map, ctx_feat_map, wfc, bfc, wcls, bcls,
                       num_classes):
    """Jitted per-call path: flatten -> concat -> fused Pallas head -> slice."""
    B = char_feat_map.shape[0]
    char_feat = char_feat_map.reshape(B, -1)
    ctx_feat = ctx_feat_map.reshape(B, -1)
    # torch.cat equivalent; tiny (B x 2560 bf16) and fused under jit.
    x = jnp.concatenate([char_feat, ctx_feat], axis=1).astype(jnp.bfloat16)

    # Pad M/batch to a full sublane tile (8) -> unmasked loads/stores.
    b_pad = max(8, pl.cdiv(B, 8) * 8)
    if b_pad != B:
        x = jnp.pad(x, ((0, b_pad - B), (0, 0)))

    n_pad = wcls.shape[1]
    # No grid: single invocation, full-array blocks resident in VMEM (<1 MB).
    logits_padded = pl.pallas_call(
        _dual_head_kernel,
        out_shape=jax.ShapeDtypeStruct((b_pad, n_pad), jnp.float32),
    )(x, wfc, bfc, wcls, bcls)

    return logits_padded[:B, :num_classes]


class KuzushijiDualHead:
    """Post-backbone head of KuzushijiDualModel with one-time weight prep."""

    def __init__(self, params, num_classes):
        w_fc = jnp.asarray(params["w_fc"], jnp.float32)    # (hidden, 2560) torch layout
        b_fc = jnp.asarray(params["b_fc"], jnp.float32)    # (hidden,)
        w_cls = jnp.asarray(params["w_cls"], jnp.float32)  # (num_classes, hidden)
        b_cls = jnp.asarray(params["b_cls"], jnp.float32)  # (num_classes,)

        hidden = w_fc.shape[0]
        self.num_classes = int(num_classes)
        n_pad = pl.cdiv(self.num_classes, 128) * 128

        # One-time prep, cached on device: pre-transposed bf16 fc weight,
        # lane-padded bf16 classifier weight, f32 biases (row vectors).
        self.wfc = jax.device_put(w_fc.T.astype(jnp.bfloat16))          # (2560, hidden)
        self.bfc = jax.device_put(b_fc.reshape(1, hidden))              # (1, hidden) f32
        wcls = jnp.zeros((hidden, n_pad), jnp.bfloat16)
        wcls = wcls.at[:, :self.num_classes].set(w_cls.T.astype(jnp.bfloat16))
        self.wcls = jax.device_put(wcls)                                 # (hidden, n_pad)
        bcls = jnp.zeros((1, n_pad), jnp.float32)
        bcls = bcls.at[:, :self.num_classes].set(b_cls)
        self.bcls = jax.device_put(bcls)                                 # (1, n_pad) f32

        # Materialize prepared weights now (not lazily on first forward).
        jax.block_until_ready((self.wfc, self.bfc, self.wcls, self.bcls))

    def __call__(self, char_feat_map, ctx_feat_map):
        return _dual_head_forward(char_feat_map, ctx_feat_map,
                                  self.wfc, self.bfc, self.wcls, self.bcls,
                                  self.num_classes)


def reference(char_feat_map, ctx_feat_map, params):
    """Pure-JAX f32 reference of the PyTorch forward (for verification)."""
    B = char_feat_map.shape[0]
    hp = jax.lax.Precision.HIGHEST
    char_feat = char_feat_map.reshape(B, -1)
    ctx_feat = ctx_feat_map.reshape(B, -1)
    combined = jnp.concatenate([char_feat, ctx_feat], axis=1)
    h = jnp.dot(combined, params["w_fc"].T, precision=hp) + params["b_fc"]
    h = jnp.maximum(h, 0.0)
    return jnp.dot(h, params["w_cls"].T, precision=hp) + params["b_cls"]


if __name__ == "__main__":
    # Small shapes consistent with the module: each backbone feature map
    # flattens to 1280, so the concatenated feature vector is 2560 (== fc in).
    B = 2
    num_classes = 10
    hidden = 128
    in_features = 2560
    char_shape = (B, 5, 16, 16)    # flattens to 1280
    ctx_shape = (B, 5, 16, 16)     # flattens to 1280

    key = jax.random.PRNGKey(0)
    k = jax.random.split(key, 6)

    char_feat_map = jax.random.normal(k[0], char_shape, jnp.float32)
    ctx_feat_map = jax.random.normal(k[1], ctx_shape, jnp.float32)

    params = dict(
        w_fc=jax.random.normal(k[2], (hidden, in_features), jnp.float32)
        * (1.0 / jnp.sqrt(in_features)),
        b_fc=jax.random.normal(k[3], (hidden,), jnp.float32) * 0.01,
        w_cls=jax.random.normal(k[4], (num_classes, hidden), jnp.float32)
        * (1.0 / jnp.sqrt(hidden)),
        b_cls=jax.random.normal(k[5], (num_classes,), jnp.float32) * 0.01,
    )

    head = KuzushijiDualHead(params, num_classes)          # one-time weight prep
    logits = head(char_feat_map, ctx_feat_map)
    logits = jax.block_until_ready(logits)

    ref = reference(char_feat_map, ctx_feat_map, params)
    assert logits.shape == (B, num_classes)
    max_err = float(jnp.max(jnp.abs(logits - ref)))
    # bf16 MXU operands vs f32 HIGHEST-precision reference: ~1e-2 expected.
    assert max_err < 3e-2, f"max abs error too large: {max_err}"

    print("KERNEL_OK")
</pallas_src>

<mosaic_0001>
module attributes {stable_mosaic.version = 11 : i64} {
  func.func @_dual_head_kernel(%arg0: memref<8x2560xbf16, #tpu.memory_space<vmem>>, %arg1: memref<2560x128xbf16, #tpu.memory_space<vmem>>, %arg2: memref<1x128xf32, #tpu.memory_space<vmem>>, %arg3: memref<128x128xbf16, #tpu.memory_space<vmem>>, %arg4: memref<1x128xf32, #tpu.memory_space<vmem>>, %arg5: memref<8x128xf32, #tpu.memory_space<vmem>>) attributes {dimension_semantics = [], scalar_prefetch = 0 : i64, scratch_operands = 0 : i64, tpu.core_type = #tpu.core_type<tc>} {
    %c0 = arith.constant 0 : index
    %c0_0 = arith.constant 0 : index
    %0 = vector.load %arg0[%c0, %c0_0] : memref<8x2560xbf16, #tpu.memory_space<vmem>>, vector<8x2560xbf16>
    %c0_1 = arith.constant 0 : index
    %c0_2 = arith.constant 0 : index
    %1 = vector.load %arg1[%c0_1, %c0_2] : memref<2560x128xbf16, #tpu.memory_space<vmem>>, vector<2560x128xbf16>
    %cst = arith.constant dense<0.000000e+00> : vector<8x128xf32>
    %2 = tpu.matmul %0, %1, %cst {dimension_numbers = #tpu.dot_dimension_numbers<[1], [0], [0], [1], [0, 0, 1, 1], [], []>} : vector<8x2560xbf16>, vector<2560x128xbf16>, vector<8x128xf32> -> vector<8x128xf32>
    %c0_3 = arith.constant 0 : index
    %c0_4 = arith.constant 0 : index
    %3 = vector.load %arg2[%c0_3, %c0_4] : memref<1x128xf32, #tpu.memory_space<vmem>>, vector<1x128xf32>
    %4 = vector.broadcast %3 : vector<1x128xf32> to vector<8x128xf32>
    %5 = arith.addf %2, %4 : vector<8x128xf32>
    %cst_5 = arith.constant 0.000000e+00 : f32
    %6 = vector.broadcast %cst_5 : f32 to vector<8x128xf32>
    %7 = arith.maximumf %5, %6 : vector<8x128xf32>
    %8 = arith.truncf %7 : vector<8x128xf32> to vector<8x128xbf16>
    %c0_6 = arith.constant 0 : index
    %c0_7 = arith.constant 0 : index
    %9 = vector.load %arg3[%c0_6, %c0_7] : memref<128x128xbf16, #tpu.memory_space<vmem>>, vector<128x128xbf16>
    %cst_8 = arith.constant dense<0.000000e+00> : vector<8x128xf32>
    %10 = tpu.matmul %8, %9, %cst_8 {dimension_numbers = #tpu.dot_dimension_numbers<[1], [0], [0], [1], [0, 0, 1, 1], [], []>} : vector<8x128xbf16>, vector<128x128xbf16>, vector<8x128xf32> -> vector<8x128xf32>
    %c0_9 = arith.constant 0 : index
    %c0_10 = arith.constant 0 : index
    %11 = vector.load %arg4[%c0_9, %c0_10] : memref<1x128xf32, #tpu.memory_space<vmem>>, vector<1x128xf32>
    %12 = vector.broadcast %11 : vector<1x128xf32> to vector<8x128xf32>
    %13 = arith.addf %10, %12 : vector<8x128xf32>
    %c0_11 = arith.constant 0 : index
    %c0_12 = arith.constant 0 : index
    %14 = vector.load %arg5[%c0_11, %c0_12] : memref<8x128xf32, #tpu.memory_space<vmem>>, vector<8x128xf32>
    tpu.vector_store %arg5[%c0_11, %c0_12], %13 {strides = array<i32>} : memref<8x128xf32, #tpu.memory_space<vmem>>, vector<8x128xf32>,
    return
  }
}

</mosaic_0001>

<llo_original>
// kernel: _dual_head_forward.1
$region0: #{_dual_head_forward.1}
  #allocation0 [shape = 'u32[]', space=smem, size = 0x4, offset = 0x4, fixed_abs, tag = 'smem constant byte address 0x4 - core index']
  #allocation1 [shape = 'u32[144,128]{1,0:T(1,128)}', space=vmem, size = 0x12000, scoped, tag = 'internal scratch']
  %s0 = inlined_call_operand.vmem [shape: bf16[8,2560], index: 0, kind: input, shape index: {}]
  %s1 = inlined_call_operand.hbm [shape: bf16[2560,128], index: 1, kind: input, shape index: {}]
  %s2 = inlined_call_operand.vmem [shape: f32[1,128], index: 2, kind: input, shape index: {}]
  %s3 = inlined_call_operand.vmem [shape: bf16[128,128], index: 3, kind: input, shape index: {}]
  %s4 = inlined_call_operand.vmem [shape: f32[1,128], index: 4, kind: input, shape index: {}]
  %s5 = inlined_call_operand.vmem [shape: f32[8,128], index: 5, kind: output, shape index: {}]
  %s6 = sld [smem:[#allocation0]]
  $region34: #{_dual_head_forward.1} parent=0
    _
  %s8 = ssub.s32 1, %s6
  %s9 = scalar_select 0, %s8, %s6
  $region1: #{_dual_head_forward.1} parent=0
    #allocation2 [shape = 'u8[655360]{0}', space=vmem, size = 0xa0000, scoped, tag = 'input window, operand 1, single buffered']
    #allocation3 [shape = 's32[1]{0}', space=sflag, size = 0x4, scoped, tag = 'scoped memory for _dual_head_forward.1']
    %10 = vsyncpa [#allocation3], 0
    // Predicated region
    $region2: #{_dual_head_forward.1} parent=1 // pred_check
      _
    $region3: #{_dual_head_forward.1} parent=1 // pred_check_branch
      %12 = sbr.rel (0) target = $region5
    $region4: #{_dual_head_forward.1} parent=1 // pred_region
      _
    $region5: #{_dual_head_forward.1} parent=1 // pred_fallthru
      _
    // Predicated region
    $region6: #{_dual_head_forward.1} parent=1 // pred_check
      _
    $region7: #{_dual_head_forward.1} parent=1 // pred_check_branch
      %14 = sbr.rel (0) target = $region9
    $region8: #{_dual_head_forward.1} parent=1 // pred_region
      %s16 = ssub.s32 20480, 20480
      %17 = vsyncadd [#allocation3], %s16
      %s18 = sshll.u32 [#allocation2], 4
      %s19 = int_to_ptr.vmem [resolvable:$true] %s18
      %24 = dma.hbm_to_vmem [thread:$0]  %s1, 20480, %s19, [#allocation3], 64, 64, 4
    $region9: #{_dual_head_forward.1} parent=1 // pred_fallthru
      _
    // Predicated region
    $region10: #{_dual_head_forward.1} parent=1 // pred_check
      _
    $region11: #{_dual_head_forward.1} parent=1 // pred_check_branch
      %26 = sbr.rel (0) target = $region13
    $region12: #{_dual_head_forward.1} parent=1 // pred_region
      _
    $region13: #{_dual_head_forward.1} parent=1 // pred_fallthru
      _
    // Predicated region
    $region14: #{_dual_head_forward.1} parent=1 // pred_check
      _
    $region15: #{_dual_head_forward.1} parent=1 // pred_check_branch
      %28 = sbr.rel (0) target = $region17
    $region16: #{_dual_head_forward.1} parent=1 // pred_region
      _
    $region17: #{_dual_head_forward.1} parent=1 // pred_fallthru
      _
    // Predicated region
    $region18: #{_dual_head_forward.1} parent=1 // pred_check
      _
    $region19: #{_dual_head_forward.1} parent=1 // pred_check_branch
      %30 = sbr.rel (0) target = $region21
    $region20: #{_dual_head_forward.1} parent=1 // pred_region
      _
    $region21: #{_dual_head_forward.1} parent=1 // pred_fallthru
      _
    // Predicated region
    $region22: #{_dual_head_forward.1} parent=1 // pred_check
      _
    $region23: #{_dual_head_forward.1} parent=1 // pred_check_branch
      %32 = sbr.rel (0) target = $region25
    $region24: #{_dual_head_forward.1} parent=1 // pred_region
      %33 = dma.done [#allocation3], 20480
    $region25: #{_dual_head_forward.1} parent=1 // pred_fallthru
      _
    %v35 = vld [vmem:[%s0] sm:$0xff]
    %v36 = vld [vmem:[%s0 + $0x8] sm:$0xff]
    %v37 = vld [vmem:[%s0 + $0x10] sm:$0xff]
    %v38 = vld [vmem:[%s0 + $0x18] sm:$0xff]
    %v39 = vld [vmem:[%s0 + $0x20] sm:$0xff]
    %v40 = vld [vmem:[%s0 + $0x28] sm:$0xff]
    %v41 = vld [vmem:[%s0 + $0x30] sm:$0xff]
    %v42 = vld [vmem:[%s0 + $0x38] sm:$0xff]
    %v43 = vld [vmem:[%s0 + $0x40] sm:$0xff]
    %v44 = vld [vmem:[%s0 + $0x48] sm:$0xff]
    %v45 = vld [vmem:[#allocation2] sm:$0xf]
    %v46 = vld [vmem:[#allocation2 + $0x4] sm:$0xf]
    %v47 = vld [vmem:[#allocation2 + $0x8] sm:$0xf]
    %v48 = vld [vmem:[#allocation2 + $0xc] sm:$0xf]
    %v49 = vld [vmem:[#allocation2 + $0x10] sm:$0xf]
    %v50 = vld [vmem:[#allocation2 + $0x14] sm:$0xf]
    %v51 = vld [vmem:[#allocation2 + $0x18] sm:$0xf]
    %v52 = vld [vmem:[#allocation2 + $0x1c] sm:$0xf]
    %v53 = vld [vmem:[#allocation2 + $0x20] sm:$0xf]
    %v54 = vld [vmem:[#allocation2 + $0x24] sm:$0xf]
    %v55 = vld [vmem:[#allocation2 + $0x28] sm:$0xf]
    %v56 = vld [vmem:[#allocation2 + $0x2c] sm:$0xf]
    %v57 = vld [vmem:[#allocation2 + $0x30] sm:$0xf]
    %v58 = vld [vmem:[#allocation2 + $0x34] sm:$0xf]
    %v59 = vld [vmem:[#allocation2 + $0x38] sm:$0xf]
    %v60 = vld [vmem:[#allocation2 + $0x3c] sm:$0xf]
    %v61 = vld [vmem:[#allocation2 + $0x40] sm:$0xf]
    %v62 = vld [vmem:[#allocation2 + $0x44] sm:$0xf]
    %v63 = vld [vmem:[#allocation2 + $0x48] sm:$0xf]
    %v64 = vld [vmem:[#allocation2 + $0x4c] sm:$0xf]
    %v65 = vld [vmem:[#allocation2 + $0x50] sm:$0xf]
    %v66 = vld [vmem:[#allocation2 + $0x54] sm:$0xf]
    %v67 = vld [vmem:[#allocation2 + $0x58] sm:$0xf]
    %v68 = vld [vmem:[#allocation2 + $0x5c] sm:$0xf]
    %v69 = vld [vmem:[#allocation2 + $0x60] sm:$0xf]
    %v70 = vld [vmem:[#allocation2 + $0x64] sm:$0xf]
    %v71 = vld [vmem:[#allocation2 + $0x68] sm:$0xf]
    %v72 = vld [vmem:[#allocation2 + $0x6c] sm:$0xf]
    %v73 = vld [vmem:[#allocation2 + $0x70] sm:$0xf]
    %v74 = vld [vmem:[#allocation2 + $0x74] sm:$0xf]
    %v75 = vld [vmem:[#allocation2 + $0x78] sm:$0xf]
    %v76 = vld [vmem:[#allocation2 + $0x7c] sm:$0xf]
    %v77 = vld [vmem:[#allocation2 + $0x80] sm:$0xf]
    %v78 = vld [vmem:[#allocation2 + $0x84] sm:$0xf]
    %v79 = vld [vmem:[#allocation2 + $0x88] sm:$0xf]
    %v80 = vld [vmem:[#allocation2 + $0x8c] sm:$0xf]
    %v81 = vld [vmem:[#allocation2 + $0x90] sm:$0xf]
    %v82 = vld [vmem:[#allocation2 + $0x94] sm:$0xf]
    %v83 = vld [vmem:[#allocation2 + $0x98] sm:$0xf]
    %v84 = vld [vmem:[#allocation2 + $0x9c] sm:$0xf]
    %v85 = vld [vmem:[#allocation2 + $0xa0] sm:$0xf]
    %v86 = vld [vmem:[#allocation2 + $0xa4] sm:$0xf]
    %v87 = vld [vmem:[#allocation2 + $0xa8] sm:$0xf]
    %v88 = vld [vmem:[#allocation2 + $0xac] sm:$0xf]
    %v89 = vld [vmem:[#allocation2 + $0xb0] sm:$0xf]
    %v90 = vld [vmem:[#allocation2 + $0xb4] sm:$0xf]
    %v91 = vld [vmem:[#allocation2 + $0xb8] sm:$0xf]
    %v92 = vld [vmem:[#allocation2 + $0xbc] sm:$0xf]
    %v93 = vld [vmem:[#allocation2 + $0xc0] sm:$0xf]
    %v94 = vld [vmem:[#allocation2 + $0xc4] sm:$0xf]
    %v95 = vld [vmem:[#allocation2 + $0xc8] sm:$0xf]
    %v96 = vld [vmem:[#allocation2 + $0xcc] sm:$0xf]
    %v97 = vld [vmem:[#allocation2 + $0xd0] sm:$0xf]
    %v98 = vld [vmem:[#allocation2 + $0xd4] sm:$0xf]
    %v99 = vld [vmem:[#allocation2 + $0xd8] sm:$0xf]
    %v100 = vld [vmem:[#allocation2 + $0xdc] sm:$0xf]
    %v101 = vld [vmem:[#allocation2 + $0xe0] sm:$0xf]
    %v102 = vld [vmem:[#allocation2 + $0xe4] sm:$0xf]
    %v103 = vld [vmem:[#allocation2 + $0xe8] sm:$0xf]
    %v104 = vld [vmem:[#allocation2 + $0xec] sm:$0xf]
    %v105 = vld [vmem:[#allocation2 + $0xf0] sm:$0xf]
    %v106 = vld [vmem:[#allocation2 + $0xf4] sm:$0xf]
    %v107 = vld [vmem:[#allocation2 + $0xf8] sm:$0xf]
    %v108 = vld [vmem:[#allocation2 + $0xfc] sm:$0xf]
    %v109 = vld [vmem:[#allocation2 + $0x100] sm:$0xf]
    %v110 = vld [vmem:[#allocation2 + $0x104] sm:$0xf]
    %v111 = vld [vmem:[#allocation2 + $0x108] sm:$0xf]
    %v112 = vld [vmem:[#allocation2 + $0x10c] sm:$0xf]
    %v113 = vld [vmem:[#allocation2 + $0x110] sm:$0xf]
    %v114 = vld [vmem:[#allocation2 + $0x114] sm:$0xf]
    %v115 = vld [vmem:[#allocation2 + $0x118] sm:$0xf]
    %v116 = vld [vmem:[#allocation2 + $0x11c] sm:$0xf]
    %v117 = vld [vmem:[#allocation2 + $0x120] sm:$0xf]
    %v118 = vld [vmem:[#allocation2 + $0x124] sm:$0xf]
    %v119 = vld [vmem:[#allocation2 + $0x128] sm:$0xf]
    %v120 = vld [vmem:[#allocation2 + $0x12c] sm:$0xf]
    %v121 = vld [vmem:[#allocation2 + $0x130] sm:$0xf]
    %v122 = vld [vmem:[#allocation2 + $0x134] sm:$0xf]
    %v123 = vld [vmem:[#allocation2 + $0x138] sm:$0xf]
    %v124 = vld [vmem:[#allocation2 + $0x13c] sm:$0xf]
    %v125 = vld [vmem:[#allocation2 + $0x140] sm:$0xf]
    %v126 = vld [vmem:[#allocation2 + $0x144] sm:$0xf]
    %v127 = vld [vmem:[#allocation2 + $0x148] sm:$0xf]
    %v128 = vld [vmem:[#allocation2 + $0x14c] sm:$0xf]
    %v129 = vld [vmem:[#allocation2 + $0x150] sm:$0xf]
    %v130 = vld [vmem:[#allocation2 + $0x154] sm:$0xf]
    %v131 = vld [vmem:[#allocation2 + $0x158] sm:$0xf]
    %v132 = vld [vmem:[#allocation2 + $0x15c] sm:$0xf]
    %v133 = vld [vmem:[#allocation2 + $0x160] sm:$0xf]
    %v134 = vld [vmem:[#allocation2 + $0x164] sm:$0xf]
    %v135 = vld [vmem:[#allocation2 + $0x168] sm:$0xf]
    %v136 = vld [vmem:[#allocation2 + $0x16c] sm:$0xf]
    %v137 = vld [vmem:[#allocation2 + $0x170] sm:$0xf]
    %v138 = vld [vmem:[#allocation2 + $0x174] sm:$0xf]
    %v139 = vld [vmem:[#allocation2 + $0x178] sm:$0xf]
    %v140 = vld [vmem:[#allocation2 + $0x17c] sm:$0xf]
    %v141 = vld [vmem:[#allocation2 + $0x180] sm:$0xf]
    %v142 = vld [vmem:[#allocation2 + $0x184] sm:$0xf]
    %v143 = vld [vmem:[#allocation2 + $0x188] sm:$0xf]
    %v144 = vld [vmem:[#allocation2 + $0x18c] sm:$0xf]
    %v145 = vld [vmem:[#allocation2 + $0x190] sm:$0xf]
    %v146 = vld [vmem:[#allocation2 + $0x194] sm:$0xf]
    %v147 = vld [vmem:[#allocation2 + $0x198] sm:$0xf]
    %v148 = vld [vmem:[#allocation2 + $0x19c] sm:$0xf]
    %v149 = vld [vmem:[#allocation2 + $0x1a0] sm:$0xf]
    %v150 = vld [vmem:[#allocation2 + $0x1a4] sm:$0xf]
    %v151 = vld [vmem:[#allocation2 + $0x1a8] sm:$0xf]
    %v152 = vld [vmem:[#allocation2 + $0x1ac] sm:$0xf]
    %v153 = vld [vmem:[#allocation2 + $0x1b0] sm:$0xf]
    %v154 = vld [vmem:[#allocation2 + $0x1b4] sm:$0xf]
    %v155 = vld [vmem:[#allocation2 + $0x1b8] sm:$0xf]
    %v156 = vld [vmem:[#allocation2 + $0x1bc] sm:$0xf]
    %v157 = vld [vmem:[#allocation2 + $0x1c0] sm:$0xf]
    %v158 = vld [vmem:[#allocation2 + $0x1c4] sm:$0xf]
    %v159 = vld [vmem:[#allocation2 + $0x1c8] sm:$0xf]
    %v160 = vld [vmem:[#allocation2 + $0x1cc] sm:$0xf]
    %v161 = vld [vmem:[#allocation2 + $0x1d0] sm:$0xf]
    %v162 = vld [vmem:[#allocation2 + $0x1d4] sm:$0xf]
    %v163 = vld [vmem:[#allocation2 + $0x1d8] sm:$0xf]
    %v164 = vld [vmem:[#allocation2 + $0x1dc] sm:$0xf]
    %v165 = vld [vmem:[#allocation2 + $0x1e0] sm:$0xf]
    %v166 = vld [vmem:[#allocation2 + $0x1e4] sm:$0xf]
    %v167 = vld [vmem:[#allocation2 + $0x1e8] sm:$0xf]
    %v168 = vld [vmem:[#allocation2 + $0x1ec] sm:$0xf]
    %v169 = vld [vmem:[#allocation2 + $0x1f0] sm:$0xf]
    %v170 = vld [vmem:[#allocation2 + $0x1f4] sm:$0xf]
    %v171 = vld [vmem:[#allocation2 + $0x1f8] sm:$0xf]
    %v172 = vld [vmem:[#allocation2 + $0x1fc] sm:$0xf]
    %v173 = vld [vmem:[#allocation2 + $0x200] sm:$0xf]
    %v174 = vld [vmem:[#allocation2 + $0x204] sm:$0xf]
    %v175 = vld [vmem:[#allocation2 + $0x208] sm:$0xf]
    %v176 = vld [vmem:[#allocation2 + $0x20c] sm:$0xf]
    %v177 = vld [vmem:[#allocation2 + $0x210] sm:$0xf]
    %v178 = vld [vmem:[#allocation2 + $0x214] sm:$0xf]
    %v179 = vld [vmem:[#allocation2 + $0x218] sm:$0xf]
    %v180 = vld [vmem:[#allocation2 + $0x21c] sm:$0xf]
    %v181 = vld [vmem:[#allocation2 + $0x220] sm:$0xf]
    %v182 = vld [vmem:[#allocation2 + $0x224] sm:$0xf]
    %v183 = vld [vmem:[#allocation2 + $0x228] sm:$0xf]
    %v184 = vld [vmem:[#allocation2 + $0x22c] sm:$0xf]
    %v185 = vld [vmem:[#allocation2 + $0x230] sm:$0xf]
    %v186 = vld [vmem:[#allocation2 + $0x234] sm:$0xf]
    %v187 = vld [vmem:[#allocation2 + $0x238] sm:$0xf]
    %v188 = vld [vmem:[#allocation2 + $0x23c] sm:$0xf]
    %v189 = vld [vmem:[#allocation2 + $0x240] sm:$0xf]
    %v190 = vld [vmem:[#allocation2 + $0x244] sm:$0xf]
    %v191 = vld [vmem:[#allocation2 + $0x248] sm:$0xf]
    %v192 = vld [vmem:[#allocation2 + $0x24c] sm:$0xf]
    %v193 = vld [vmem:[#allocation2 + $0x250] sm:$0xf]
    %v194 = vld [vmem:[#allocation2 + $0x254] sm:$0xf]
    %v195 = vld [vmem:[#allocation2 + $0x258] sm:$0xf]
    %v196 = vld [vmem:[#allocation2 + $0x25c] sm:$0xf]
    %v197 = vld [vmem:[#allocation2 + $0x260] sm:$0xf]
    %v198 = vld [vmem:[#allocation2 + $0x264] sm:$0xf]
    %v199 = vld [vmem:[#allocation2 + $0x268] sm:$0xf]
    %v200 = vld [vmem:[#allocation2 + $0x26c] sm:$0xf]
    %v201 = vld [vmem:[#allocation2 + $0x270] sm:$0xf]
    %v202 = vld [vmem:[#allocation2 + $0x274] sm:$0xf]
    %v203 = vld [vmem:[#allocation2 + $0x278] sm:$0xf]
    %v204 = vld [vmem:[#allocation2 + $0x27c] sm:$0xf]
    %v205 = vld [vmem:[#allocation2 + $0x280] sm:$0xf]
    %v206 = vld [vmem:[#allocation2 + $0x284] sm:$0xf]
    %v207 = vld [vmem:[#allocation2 + $0x288] sm:$0xf]
    %v208 = vld [vmem:[#allocation2 + $0x28c] sm:$0xf]
    %v209 = vld [vmem:[#allocation2 + $0x290] sm:$0xf]
    %v210 = vld [vmem:[#allocation2 + $0x294] sm:$0xf]
    %v211 = vld [vmem:[#allocation2 + $0x298] sm:$0xf]
    %v212 = vld [vmem:[#allocation2 + $0x29c] sm:$0xf]
    %v213 = vld [vmem:[#allocation2 + $0x2a0] sm:$0xf]
    %v214 = vld [vmem:[#allocation2 + $0x2a4] sm:$0xf]
    %v215 = vld [vmem:[#allocation2 + $0x2a8] sm:$0xf]
    %v216 = vld [vmem:[#allocation2 + $0x2ac] sm:$0xf]
    %v217 = vld [vmem:[#allocation2 + $0x2b0] sm:$0xf]
    %v218 = vld [vmem:[#allocation2 + $0x2b4] sm:$0xf]
    %v219 = vld [vmem:[#allocation2 + $0x2b8] sm:$0xf]
    %v220 = vld [vmem:[#allocation2 + $0x2bc] sm:$0xf]
    %v221 = vld [vmem:[#allocation2 + $0x2c0] sm:$0xf]
    %v222 = vld [vmem:[#allocation2 + $0x2c4] sm:$0xf]
    %v223 = vld [vmem:[#allocation2 + $0x2c8] sm:$0xf]
    %v224 = vld [vmem:[#allocation2 + $0x2cc] sm:$0xf]
    %v225 = vld [vmem:[#allocation2 + $0x2d0] sm:$0xf]
    %v226 = vld [vmem:[#allocation2 + $0x2d4] sm:$0xf]
    %v227 = vld [vmem:[#allocation2 + $0x2d8] sm:$0xf]
    %v228 = vld [vmem:[#allocation2 + $0x2dc] sm:$0xf]
    %v229 = vld [vmem:[#allocation2 + $0x2e0] sm:$0xf]
    %v230 = vld [vmem:[#allocation2 + $0x2e4] sm:$0xf]
    %v231 = vld [vmem:[#allocation2 + $0x2e8] sm:$0xf]
    %v232 = vld [vmem:[#allocation2 + $0x2ec] sm:$0xf]
    %v233 = vld [vmem:[#allocation2 + $0x2f0] sm:$0xf]
    %v234 = vld [vmem:[#allocation2 + $0x2f4] sm:$0xf]
    %v235 = vld [vmem:[#allocation2 + $0x2f8] sm:$0xf]
    %v236 = vld [vmem:[#allocation2 + $0x2fc] sm:$0xf]
    %v237 = vld [vmem:[#allocation2 + $0x300] sm:$0xf]
    %v238 = vld [vmem:[#allocation2 + $0x304] sm:$0xf]
    %v239 = vld [vmem:[#allocation2 + $0x308] sm:$0xf]
    %v240 = vld [vmem:[#allocation2 + $0x30c] sm:$0xf]
    %v241 = vld [vmem:[#allocation2 + $0x310] sm:$0xf]
    %v242 = vld [vmem:[#allocation2 + $0x314] sm:$0xf]
    %v243 = vld [vmem:[#allocation2 + $0x318] sm:$0xf]
    %v244 = vld [vmem:[#allocation2 + $0x31c] sm:$0xf]
    %v245 = vld [vmem:[#allocation2 + $0x320] sm:$0xf]
    %v246 = vld [vmem:[#allocation2 + $0x324] sm:$0xf]
    %v247 = vld [vmem:[#allocation2 + $0x328] sm:$0xf]
    %v248 = vld [vmem:[#allocation2 + $0x32c] sm:$0xf]
    %v249 = vld [vmem:[#allocation2 + $0x330] sm:$0xf]
    %v250 = vld [vmem:[#allocation2 + $0x334] sm:$0xf]
    %v251 = vld [vmem:[#allocation2 + $0x338] sm:$0xf]
    %v252 = vld [vmem:[#allocation2 + $0x33c] sm:$0xf]
    %v253 = vld [vmem:[#allocation2 + $0x340] sm:$0xf]
    %v254 = vld [vmem:[#allocation2 + $0x344] sm:$0xf]
    %v255 = vld [vmem:[#allocation2 + $0x348] sm:$0xf]
    %v256 = vld [vmem:[#allocation2 + $0x34c] sm:$0xf]
    %v257 = vld [vmem:[#allocation2 + $0x350] sm:$0xf]
    %v258 = vld [vmem:[#allocation2 + $0x354] sm:$0xf]
    %v259 = vld [vmem:[#allocation2 + $0x358] sm:$0xf]
    %v260 = vld [vmem:[#allocation2 + $0x35c] sm:$0xf]
    %v261 = vld [vmem:[#allocation2 + $0x360] sm:$0xf]
    %v262 = vld [vmem:[#allocation2 + $0x364] sm:$0xf]
    %v263 = vld [vmem:[#allocation2 + $0x368] sm:$0xf]
    %v264 = vld [vmem:[#allocation2 + $0x36c] sm:$0xf]
    %v265 = vld [vmem:[#allocation2 + $0x370] sm:$0xf]
    %v266 = vld [vmem:[#allocation2 + $0x374] sm:$0xf]
    %v267 = vld [vmem:[#allocation2 + $0x378] sm:$0xf]
    %v268 = vld [vmem:[#allocation2 + $0x37c] sm:$0xf]
    %v269 = vld [vmem:[#allocation2 + $0x380] sm:$0xf]
    %v270 = vld [vmem:[#allocation2 + $0x384] sm:$0xf]
    %v271 = vld [vmem:[#allocation2 + $0x388] sm:$0xf]
    %v272 = vld [vmem:[#allocation2 + $0x38c] sm:$0xf]
    %v273 = vld [vmem:[#allocation2 + $0x390] sm:$0xf]
    %v274 = vld [vmem:[#allocation2 + $0x394] sm:$0xf]
    %v275 = vld [vmem:[#allocation2 + $0x398] sm:$0xf]
    %v276 = vld [vmem:[#allocation2 + $0x39c] sm:$0xf]
    %v277 = vld [vmem:[#allocation2 + $0x3a0] sm:$0xf]
    %v278 = vld [vmem:[#allocation2 + $0x3a4] sm:$0xf]
    %v279 = vld [vmem:[#allocation2 + $0x3a8] sm:$0xf]
    %v280 = vld [vmem:[#allocation2 + $0x3ac] sm:$0xf]
    %v281 = vld [vmem:[#allocation2 + $0x3b0] sm:$0xf]
    %v282 = vld [vmem:[#allocation2 + $0x3b4] sm:$0xf]
    %v283 = vld [vmem:[#allocation2 + $0x3b8] sm:$0xf]
    %v284 = vld [vmem:[#allocation2 + $0x3bc] sm:$0xf]
    %v285 = vld [vmem:[#allocation2 + $0x3c0] sm:$0xf]
    %v286 = vld [vmem:[#allocation2 + $0x3c4] sm:$0xf]
    %v287 = vld [vmem:[#allocation2 + $0x3c8] sm:$0xf]
    %v288 = vld [vmem:[#allocation2 + $0x3cc] sm:$0xf]
    %v289 = vld [vmem:[#allocation2 + $0x3d0] sm:$0xf]
    %v290 = vld [vmem:[#allocation2 + $0x3d4] sm:$0xf]
    %v291 = vld [vmem:[#allocation2 + $0x3d8] sm:$0xf]
    %v292 = vld [vmem:[#allocation2 + $0x3dc] sm:$0xf]
    %v293 = vld [vmem:[#allocation2 + $0x3e0] sm:$0xf]
    %v294 = vld [vmem:[#allocation2 + $0x3e4] sm:$0xf]
    %v295 = vld [vmem:[#allocation2 + $0x3e8] sm:$0xf]
    %v296 = vld [vmem:[#allocation2 + $0x3ec] sm:$0xf]
    %v297 = vld [vmem:[#allocation2 + $0x3f0] sm:$0xf]
    %v298 = vld [vmem:[#allocation2 + $0x3f4] sm:$0xf]
    %v299 = vld [vmem:[#allocation2 + $0x3f8] sm:$0xf]
    %v300 = vld [vmem:[#allocation2 + $0x3fc] sm:$0xf]
    %v301 = vld [vmem:[#allocation2 + $0x400] sm:$0xf]
    %v302 = vld [vmem:[#allocation2 + $0x404] sm:$0xf]
    %v303 = vld [vmem:[#allocation2 + $0x408] sm:$0xf]
    %v304 = vld [vmem:[#allocation2 + $0x40c] sm:$0xf]
    %v305 = vld [vmem:[#allocation2 + $0x410] sm:$0xf]
    %v306 = vld [vmem:[#allocation2 + $0x414] sm:$0xf]
    %v307 = vld [vmem:[#allocation2 + $0x418] sm:$0xf]
    %v308 = vld [vmem:[#allocation2 + $0x41c] sm:$0xf]
    %v309 = vld [vmem:[#allocation2 + $0x420] sm:$0xf]
    %v310 = vld [vmem:[#allocation2 + $0x424] sm:$0xf]
    %v311 = vld [vmem:[#allocation2 + $0x428] sm:$0xf]
    %v312 = vld [vmem:[#allocation2 + $0x42c] sm:$0xf]
    %v313 = vld [vmem:[#allocation2 + $0x430] sm:$0xf]
    %v314 = vld [vmem:[#allocation2 + $0x434] sm:$0xf]
    %v315 = vld [vmem:[#allocation2 + $0x438] sm:$0xf]
    %v316 = vld [vmem:[#allocation2 + $0x43c] sm:$0xf]
    %v317 = vld [vmem:[#allocation2 + $0x440] sm:$0xf]
    %v318 = vld [vmem:[#allocation2 + $0x444] sm:$0xf]
    %v319 = vld [vmem:[#allocation2 + $0x448] sm:$0xf]
    %v320 = vld [vmem:[#allocation2 + $0x44c] sm:$0xf]
    %v321 = vld [vmem:[#allocation2 + $0x450] sm:$0xf]
    %v322 = vld [vmem:[#allocation2 + $0x454] sm:$0xf]
    %v323 = vld [vmem:[#allocation2 + $0x458] sm:$0xf]
    %v324 = vld [vmem:[#allocation2 + $0x45c] sm:$0xf]
    %v325 = vld [vmem:[#allocation2 + $0x460] sm:$0xf]
    %v326 = vld [vmem:[#allocation2 + $0x464] sm:$0xf]
    %v327 = vld [vmem:[#allocation2 + $0x468] sm:$0xf]
    %v328 = vld [vmem:[#allocation2 + $0x46c] sm:$0xf]
    %v329 = vld [vmem:[#allocation2 + $0x470] sm:$0xf]
    %v330 = vld [vmem:[#allocation2 + $0x474] sm:$0xf]
    %v331 = vld [vmem:[#allocation2 + $0x478] sm:$0xf]
    %v332 = vld [vmem:[#allocation2 + $0x47c] sm:$0xf]
    %v333 = vld [vmem:[#allocation2 + $0x480] sm:$0xf]
    %v334 = vld [vmem:[#allocation2 + $0x484] sm:$0xf]
    %v335 = vld [vmem:[#allocation2 + $0x488] sm:$0xf]
    %v336 = vld [vmem:[#allocation2 + $0x48c] sm:$0xf]
    %v337 = vld [vmem:[#allocation2 + $0x490] sm:$0xf]
    %v338 = vld [vmem:[#allocation2 + $0x494] sm:$0xf]
    %v339 = vld [vmem:[#allocation2 + $0x498] sm:$0xf]
    %v340 = vld [vmem:[#allocation2 + $0x49c] sm:$0xf]
    %v341 = vld [vmem:[#allocation2 + $0x4a0] sm:$0xf]
    %v342 = vld [vmem:[#allocation2 + $0x4a4] sm:$0xf]
    %v343 = vld [vmem:[#allocation2 + $0x4a8] sm:$0xf]
    %v344 = vld [vmem:[#allocation2 + $0x4ac] sm:$0xf]
    %v345 = vld [vmem:[#allocation2 + $0x4b0] sm:$0xf]
    %v346 = vld [vmem:[#allocation2 + $0x4b4] sm:$0xf]
    %v347 = vld [vmem:[#allocation2 + $0x4b8] sm:$0xf]
    %v348 = vld [vmem:[#allocation2 + $0x4bc] sm:$0xf]
    %v349 = vld [vmem:[#allocation2 + $0x4c0] sm:$0xf]
    %v350 = vld [vmem:[#allocation2 + $0x4c4] sm:$0xf]
    %v351 = vld [vmem:[#allocation2 + $0x4c8] sm:$0xf]
    %v352 = vld [vmem:[#allocation2 + $0x4cc] sm:$0xf]
    %v353 = vld [vmem:[#allocation2 + $0x4d0] sm:$0xf]
    %v354 = vld [vmem:[#allocation2 + $0x4d4] sm:$0xf]
    %v355 = vld [vmem:[#allocation2 + $0x4d8] sm:$0xf]
    %v356 = vld [vmem:[#allocation2 + $0x4dc] sm:$0xf]
    %v357 = vld [vmem:[#allocation2 + $0x4e0] sm:$0xf]
    %v358 = vld [vmem:[#allocation2 + $0x4e4] sm:$0xf]
    %v359 = vld [vmem:[#allocation2 + $0x4e8] sm:$0xf]
    %v360 = vld [vmem:[#allocation2 + $0x4ec] sm:$0xf]
    %v361 = vld [vmem:[#allocation2 + $0x4f0] sm:$0xf]
    %v362 = vld [vmem:[#allocation2 + $0x4f4] sm:$0xf]
    %v363 = vld [vmem:[#allocation2 + $0x4f8] sm:$0xf]
    %v364 = vld [vmem:[#allocation2 + $0x4fc] sm:$0xf]
    %v365 = vld [vmem:[%s2] sm:$0x1]
    %v367 = vlaneseq
    %v368 = vshrl.u32 %v367, 7
    %v369 = vsub.s32 0, %v368
    %v370 = vrot.slane %v365, %v369
    %v382 = vunpack.c.l.b16 %v35
    %v383 = vunpack.c.h.b16 %v35
    %v384 = vunpack.c.l.b16 %v36
    %v385 = vunpack.c.h.b16 %v36
    %v386 = vunpack.c.l.b16 %v37
    %v387 = vunpack.c.h.b16 %v37
    %v388 = vunpack.c.l.b16 %v38
    %v389 = vunpack.c.h.b16 %v38
    %v390 = vunpack.c.l.b16 %v39
    %v391 = vunpack.c.h.b16 %v39
    %v392 = vunpack.c.l.b16 %v40
    %v393 = vunpack.c.h.b16 %v40
    %v394 = vunpack.c.l.b16 %v41
    %v395 = vunpack.c.h.b16 %v41
    %v396 = vunpack.c.l.b16 %v42
    %v397 = vunpack.c.h.b16 %v42
    %v398 = vunpack.c.l.b16 %v43
    %v399 = vunpack.c.h.b16 %v43
    %v400 = vunpack.c.l.b16 %v44
    %v401 = vunpack.c.h.b16 %v44
    %v402 = vpack.c.b16 %v382, %v382
    %v403 = vpack.c.b16 %v383, %v383
    %v404 = vpack.c.b16 %v384, %v384
    %v405 = vpack.c.b16 %v385, %v385
    %v406 = vpack.c.b16 %v386, %v386
    %v407 = vpack.c.b16 %v387, %v387
    %v408 = vpack.c.b16 %v388, %v388
    %v409 = vpack.c.b16 %v389, %v389
    %v410 = vpack.c.b16 %v390, %v390
    %v411 = vpack.c.b16 %v391, %v391
    %v412 = vpack.c.b16 %v392, %v392
    %v413 = vpack.c.b16 %v393, %v393
    %v414 = vpack.c.b16 %v394, %v394
    %v415 = vpack.c.b16 %v395, %v395
    %v416 = vpack.c.b16 %v396, %v396
    %v417 = vpack.c.b16 %v397, %v397
    %v418 = vpack.c.b16 %v398, %v398
    %v419 = vpack.c.b16 %v399, %v399
    %v420 = vpack.c.b16 %v400, %v400
    %v421 = vpack.c.b16 %v401, %v401
    %v762 = vunpack.c.l.b16 %v45
    %v763 = vunpack.c.l.b16 %v46
    %v764 = vunpack.c.l.b16 %v47
    %v765 = vunpack.c.l.b16 %v48
    %v766 = vunpack.c.l.b16 %v49
    %v767 = vunpack.c.l.b16 %v50
    %v768 = vunpack.c.l.b16 %v51
    %v769 = vunpack.c.l.b16 %v52
    %v770 = vunpack.c.l.b16 %v53
    %v771 = vunpack.c.l.b16 %v54
    %v772 = vunpack.c.l.b16 %v55
    %v773 = vunpack.c.l.b16 %v56
    %v774 = vunpack.c.l.b16 %v57
    %v775 = vunpack.c.l.b16 %v58
    %v776 = vunpack.c.l.b16 %v59
    %v777 = vunpack.c.l.b16 %v60
    %v778 = vunpack.c.l.b16 %v61
    %v779 = vunpack.c.l.b16 %v62
    %v780 = vunpack.c.l.b16 %v63
    %v781 = vunpack.c.l.b16 %v64
    %v782 = vunpack.c.l.b16 %v65
    %v783 = vunpack.c.l.b16 %v66
    %v784 = vunpack.c.l.b16 %v67
    %v785 = vunpack.c.l.b16 %v68
    %v786 = vunpack.c.l.b16 %v69
    %v787 = vunpack.c.l.b16 %v70
    %v788 = vunpack.c.l.b16 %v71
    %v789 = vunpack.c.l.b16 %v72
    %v790 = vunpack.c.l.b16 %v73
    %v791 = vunpack.c.l.b16 %v74
    %v792 = vunpack.c.l.b16 %v75
    %v793 = vunpack.c.l.b16 %v76
    %v794 = vunpack.c.l.b16 %v77
    %v795 = vunpack.c.l.b16 %v78
    %v796 = vunpack.c.l.b16 %v79
    %v797 = vunpack.c.l.b16 %v80
    %v798 = vunpack.c.l.b16 %v81
    %v799 = vunpack.c.l.b16 %v82
    %v800 = vunpack.c.l.b16 %v83
    %v801 = vunpack.c.l.b16 %v84
    %v802 = vunpack.c.l.b16 %v85
    %v803 = vunpack.c.l.b16 %v86
    %v804 = vunpack.c.l.b16 %v87
    %v805 = vunpack.c.l.b16 %v88
    %v806 = vunpack.c.l.b16 %v89
    %v807 = vunpack.c.l.b16 %v90
    %v808 = vunpack.c.l.b16 %v91
    %v809 = vunpack.c.l.b16 %v92
    %v810 = vunpack.c.l.b16 %v93
    %v811 = vunpack.c.l.b16 %v94
    %v812 = vunpack.c.l.b16 %v95
    %v813 = vunpack.c.l.b16 %v96
    %v814 = vunpack.c.l.b16 %v97
    %v815 = vunpack.c.l.b16 %v98
    %v816 = vunpack.c.l.b16 %v99
    %v817 = vunpack.c.l.b16 %v100
    %v818 = vunpack.c.l.b16 %v101
    %v819 = vunpack.c.l.b16 %v102
    %v820 = vunpack.c.l.b16 %v103
    %v821 = vunpack.c.l.b16 %v104
    %v822 = vunpack.c.l.b16 %v105
    %v823 = vunpack.c.l.b16 %v106
    %v824 = vunpack.c.l.b16 %v107
    %v825 = vunpack.c.l.b16 %v108
    %v826 = vunpack.c.l.b16 %v109
    %v827 = vunpack.c.l.b16 %v110
    %v828 = vunpack.c.l.b16 %v111
    %v829 = vunpack.c.l.b16 %v112
    %v830 = vunpack.c.l.b16 %v113
    %v831 = vunpack.c.l.b16 %v114
    %v832 = vunpack.c.l.b16 %v115
    %v833 = vunpack.c.l.b16 %v116
    %v834 = vunpack.c.l.b16 %v117
    %v835 = vunpack.c.l.b16 %v118
    %v836 = vunpack.c.l.b16 %v119
    %v837 = vunpack.c.l.b16 %v120
    %v838 = vunpack.c.l.b16 %v121
    %v839 = vunpack.c.l.b16 %v122
    %v840 = vunpack.c.l.b16 %v123
    %v841 = vunpack.c.l.b16 %v124
    %v842 = vunpack.c.l.b16 %v125
    %v843 = vunpack.c.l.b16 %v126
    %v844 = vunpack.c.l.b16 %v127
    %v845 = vunpack.c.l.b16 %v128
    %v846 = vunpack.c.l.b16 %v129
    %v847 = vunpack.c.l.b16 %v130
    %v848 = vunpack.c.l.b16 %v131
    %v849 = vunpack.c.l.b16 %v132
    %v850 = vunpack.c.l.b16 %v133
    %v851 = vunpack.c.l.b16 %v134
    %v852 = vunpack.c.l.b16 %v135
    %v853 = vunpack.c.l.b16 %v136
    %v854 = vunpack.c.l.b16 %v137
    %v855 = vunpack.c.l.b16 %v138
    %v856 = vunpack.c.l.b16 %v139
    %v857 = vunpack.c.l.b16 %v140
    %v858 = vunpack.c.l.b16 %v141
    %v859 = vunpack.c.l.b16 %v142
    %v860 = vunpack.c.l.b16 %v143
    %v861 = vunpack.c.l.b16 %v144
    %v862 = vunpack.c.l.b16 %v145
    %v863 = vunpack.c.l.b16 %v146
    %v864 = vunpack.c.l.b16 %v147
    %v865 = vunpack.c.l.b16 %v148
    %v866 = vunpack.c.l.b16 %v149
    %v867 = vunpack.c.l.b16 %v150
    %v868 = vunpack.c.l.b16 %v151
    %v869 = vunpack.c.l.b16 %v152
    %v870 = vunpack.c.l.b16 %v153
    %v871 = vunpack.c.l.b16 %v154
    %v872 = vunpack.c.l.b16 %v155
    %v873 = vunpack.c.l.b16 %v156
    %v874 = vunpack.c.l.b16 %v157
    %v875 = vunpack.c.l.b16 %v158
    %v876 = vunpack.c.l.b16 %v159
    %v877 = vunpack.c.l.b16 %v160
    %v878 = vunpack.c.l.b16 %v161
    %v879 = vunpack.c.l.b16 %v162
    %v880 = vunpack.c.l.b16 %v163
    %v881 = vunpack.c.l.b16 %v164
    %v882 = vunpack.c.l.b16 %v165
    %v883 = vunpack.c.l.b16 %v166
    %v884 = vunpack.c.l.b16 %v167
    %v885 = vunpack.c.l.b16 %v168
    %v886 = vunpack.c.l.b16 %v169
    %v887 = vunpack.c.l.b16 %v170
    %v888 = vunpack.c.l.b16 %v171
    %v889 = vunpack.c.l.b16 %v172
    %v890 = vunpack.c.l.b16 %v173
    %v891 = vunpack.c.l.b16 %v174
    %v892 = vunpack.c.l.b16 %v175
    %v893 = vunpack.c.l.b16 %v176
    %v894 = vunpack.c.l.b16 %v177
    %v895 = vunpack.c.l.b16 %v178
    %v896 = vunpack.c.l.b16 %v179
    %v897 = vunpack.c.l.b16 %v180
    %v898 = vunpack.c.l.b16 %v181
    %v899 = vunpack.c.l.b16 %v182
    %v900 = vunpack.c.l.b16 %v183
    %v901 = vunpack.c.l.b16 %v184
    %v902 = vunpack.c.l.b16 %v185
    %v903 = vunpack.c.l.b16 %v186
    %v904 = vunpack.c.l.b16 %v187
    %v905 = vunpack.c.l.b16 %v188
    %v906 = vunpack.c.l.b16 %v189
    %v907 = vunpack.c.l.b16 %v190
    %v908 = vunpack.c.l.b16 %v191
    %v909 = vunpack.c.l.b16 %v192
    %v910 = vunpack.c.l.b16 %v193
    %v911 = vunpack.c.l.b16 %v194
    %v912 = vunpack.c.l.b16 %v195
    %v913 = vunpack.c.l.b16 %v196
    %v914 = vunpack.c.l.b16 %v197
    %v915 = vunpack.c.l.b16 %v198
    %v916 = vunpack.c.l.b16 %v199
    %v917 = vunpack.c.l.b16 %v200
    %v918 = vunpack.c.l.b16 %v201
    %v919 = vunpack.c.l.b16 %v202
    %v920 = vunpack.c.l.b16 %v203
    %v921 = vunpack.c.l.b16 %v204
    %v922 = vunpack.c.l.b16 %v205
    %v923 = vunpack.c.l.b16 %v206
    %v924 = vunpack.c.l.b16 %v207
    %v925 = vunpack.c.l.b16 %v208
    %v926 = vunpack.c.l.b16 %v209
    %v927 = vunpack.c.l.b16 %v210
    %v928 = vunpack.c.l.b16 %v211
    %v929 = vunpack.c.l.b16 %v212
    %v930 = vunpack.c.l.b16 %v213
    %v931 = vunpack.c.l.b16 %v214
    %v932 = vunpack.c.l.b16 %v215
    %v933 = vunpack.c.l.b16 %v216
    %v934 = vunpack.c.l.b16 %v217
    %v935 = vunpack.c.l.b16 %v218
    %v936 = vunpack.c.l.b16 %v219
    %v937 = vunpack.c.l.b16 %v220
    %v938 = vunpack.c.l.b16 %v221
    %v939 = vunpack.c.l.b16 %v222
    %v940 = vunpack.c.l.b16 %v223
    %v941 = vunpack.c.l.b16 %v224
    %v942 = vunpack.c.l.b16 %v225
    %v943 = vunpack.c.l.b16 %v226
    %v944 = vunpack.c.l.b16 %v227
    %v945 = vunpack.c.l.b16 %v228
    %v946 = vunpack.c.l.b16 %v229
    %v947 = vunpack.c.l.b16 %v230
    %v948 = vunpack.c.l.b16 %v231
    %v949 = vunpack.c.l.b16 %v232
    %v950 = vunpack.c.l.b16 %v233
    %v951 = vunpack.c.l.b16 %v234
    %v952 = vunpack.c.l.b16 %v235
    %v953 = vunpack.c.l.b16 %v236
    %v954 = vunpack.c.l.b16 %v237
    %v955 = vunpack.c.l.b16 %v238
    %v956 = vunpack.c.l.b16 %v239
    %v957 = vunpack.c.l.b16 %v240
    %v958 = vunpack.c.l.b16 %v241
    %v959 = vunpack.c.l.b16 %v242
    %v960 = vunpack.c.l.b16 %v243
    %v961 = vunpack.c.l.b16 %v244
    %v962 = vunpack.c.l.b16 %v245
    %v963 = vunpack.c.l.b16 %v246
    %v964 = vunpack.c.l.b16 %v247
    %v965 = vunpack.c.l.b16 %v248
    %v966 = vunpack.c.l.b16 %v249
    %v967 = vunpack.c.l.b16 %v250
    %v968 = vunpack.c.l.b16 %v251
    %v969 = vunpack.c.l.b16 %v252
    %v970 = vunpack.c.l.b16 %v253
    %v971 = vunpack.c.l.b16 %v254
    %v972 = vunpack.c.l.b16 %v255
    %v973 = vunpack.c.l.b16 %v256
    %v974 = vunpack.c.l.b16 %v257
    %v975 = vunpack.c.l.b16 %v258
    %v976 = vunpack.c.l.b16 %v259
    %v977 = vunpack.c.l.b16 %v260
    %v978 = vunpack.c.l.b16 %v261
    %v979 = vunpack.c.l.b16 %v262
    %v980 = vunpack.c.l.b16 %v263
    %v981 = vunpack.c.l.b16 %v264
    %v982 = vunpack.c.l.b16 %v265
    %v983 = vunpack.c.l.b16 %v266
    %v984 = vunpack.c.l.b16 %v267
    %v985 = vunpack.c.l.b16 %v268
    %v986 = vunpack.c.l.b16 %v269
    %v987 = vunpack.c.l.b16 %v270
    %v988 = vunpack.c.l.b16 %v271
    %v989 = vunpack.c.l.b16 %v272
    %v990 = vunpack.c.l.b16 %v273
    %v991 = vunpack.c.l.b16 %v274
    %v992 = vunpack.c.l.b16 %v275
    %v993 = vunpack.c.l.b16 %v276
    %v994 = vunpack.c.l.b16 %v277
    %v995 = vunpack.c.l.b16 %v278
    %v996 = vunpack.c.l.b16 %v279
    %v997 = vunpack.c.l.b16 %v280
    %v998 = vunpack.c.l.b16 %v281
    %v999 = vunpack.c.l.b16 %v282
    %v1000 = vunpack.c.l.b16 %v283
    %v1001 = vunpack.c.l.b16 %v284
    %v1002 = vunpack.c.l.b16 %v285
    %v1003 = vunpack.c.l.b16 %v286
    %v1004 = vunpack.c.l.b16 %v287
    %v1005 = vunpack.c.l.b16 %v288
    %v1006 = vunpack.c.l.b16 %v289
    %v1007 = vunpack.c.l.b16 %v290
    %v1008 = vunpack.c.l.b16 %v291
    %v1009 = vunpack.c.l.b16 %v292
    %v1010 = vunpack.c.l.b16 %v293
    %v1011 = vunpack.c.l.b16 %v294
    %v1012 = vunpack.c.l.b16 %v295
    %v1013 = vunpack.c.l.b16 %v296
    %v1014 = vunpack.c.l.b16 %v297
    %v1015 = vunpack.c.l.b16 %v298
    %v1016 = vunpack.c.l.b16 %v299
    %v1017 = vunpack.c.l.b16 %v300
    %v1018 = vunpack.c.l.b16 %v301
    %v1019 = vunpack.c.l.b16 %v302
    %v1020 = vunpack.c.l.b16 %v303
    %v1021 = vunpack.c.l.b16 %v304
    %v1022 = vunpack.c.l.b16 %v305
    %v1023 = vunpack.c.l.b16 %v306
    %v1024 = vunpack.c.l.b16 %v307
    %v1025 = vunpack.c.l.b16 %v308
    %v1026 = vunpack.c.l.b16 %v309
    %v1027 = vunpack.c.l.b16 %v310
    %v1028 = vunpack.c.l.b16 %v311
    %v1029 = vunpack.c.l.b16 %v312
    %v1030 = vunpack.c.l.b16 %v313
    %v1031 = vunpack.c.l.b16 %v314
    %v1032 = vunpack.c.l.b16 %v315
    %v1033 = vunpack.c.l.b16 %v316
    %v1034 = vunpack.c.l.b16 %v317
    %v1035 = vunpack.c.l.b16 %v318
    %v1036 = vunpack.c.l.b16 %v319
    %v1037 = vunpack.c.l.b16 %v320
    %v1038 = vunpack.c.l.b16 %v321
    %v1039 = vunpack.c.l.b16 %v322
    %v1040 = vunpack.c.l.b16 %v323
    %v1041 = vunpack.c.l.b16 %v324
    %v1042 = vunpack.c.l.b16 %v325
    %v1043 = vunpack.c.l.b16 %v326
    %v1044 = vunpack.c.l.b16 %v327
    %v1045 = vunpack.c.l.b16 %v328
    %v1046 = vunpack.c.l.b16 %v329
    %v1047 = vunpack.c.l.b16 %v330
    %v1048 = vunpack.c.l.b16 %v331
    %v1049 = vunpack.c.l.b16 %v332
    %v1050 = vunpack.c.l.b16 %v333
    %v1051 = vunpack.c.l.b16 %v334
    %v1052 = vunpack.c.l.b16 %v335
    %v1053 = vunpack.c.l.b16 %v336
    %v1054 = vunpack.c.l.b16 %v337
    %v1055 = vunpack.c.l.b16 %v338
    %v1056 = vunpack.c.l.b16 %v339
    %v1057 = vunpack.c.l.b16 %v340
    %v1058 = vunpack.c.l.b16 %v341
    %v1059 = vunpack.c.l.b16 %v342
    %v1060 = vunpack.c.l.b16 %v343
    %v1061 = vunpack.c.l.b16 %v344
    %v1062 = vunpack.c.l.b16 %v345
    %v1063 = vunpack.c.l.b16 %v346
    %v1064 = vunpack.c.l.b16 %v347
    %v1065 = vunpack.c.l.b16 %v348
    %v1066 = vunpack.c.l.b16 %v349
    %v1067 = vunpack.c.l.b16 %v350
    %v1068 = vunpack.c.l.b16 %v351
    %v1069 = vunpack.c.l.b16 %v352
    %v1070 = vunpack.c.l.b16 %v353
    %v1071 = vunpack.c.l.b16 %v354
    %v1072 = vunpack.c.l.b16 %v355
    %v1073 = vunpack.c.l.b16 %v356
    %v1074 = vunpack.c.l.b16 %v357
    %v1075 = vunpack.c.l.b16 %v358
    %v1076 = vunpack.c.l.b16 %v359
    %v1077 = vunpack.c.l.b16 %v360
    %v1078 = vunpack.c.l.b16 %v361
    %v1079 = vunpack.c.l.b16 %v362
    %v1080 = vunpack.c.l.b16 %v363
    %v1081 = vunpack.c.l.b16 %v364
    %v1082 = vpack.c.b16 %v763, %v762
    %v1083 = vpack.c.b16 %v765, %v764
    %v1084 = vpack.c.b16 %v767, %v766
    %v1085 = vpack.c.b16 %v769, %v768
    %v1086 = vpack.c.b16 %v771, %v770
    %v1087 = vpack.c.b16 %v773, %v772
    %v1088 = vpack.c.b16 %v775, %v774
    %v1089 = vpack.c.b16 %v777, %v776
    %v1090 = vpack.c.b16 %v779, %v778
    %v1091 = vpack.c.b16 %v781, %v780
    %v1092 = vpack.c.b16 %v783, %v782
    %v1093 = vpack.c.b16 %v785, %v784
    %v1094 = vpack.c.b16 %v787, %v786
    %v1095 = vpack.c.b16 %v789, %v788
    %v1096 = vpack.c.b16 %v791, %v790
    %v1097 = vpack.c.b16 %v793, %v792
    %v1098 = vpack.c.b16 %v795, %v794
    %v1099 = vpack.c.b16 %v797, %v796
    %v1100 = vpack.c.b16 %v799, %v798
    %v1101 = vpack.c.b16 %v801, %v800
    %v1102 = vpack.c.b16 %v803, %v802
    %v1103 = vpack.c.b16 %v805, %v804
    %v1104 = vpack.c.b16 %v807, %v806
    %v1105 = vpack.c.b16 %v809, %v808
    %v1106 = vpack.c.b16 %v811, %v810
    %v1107 = vpack.c.b16 %v813, %v812
    %v1108 = vpack.c.b16 %v815, %v814
    %v1109 = vpack.c.b16 %v817, %v816
    %v1110 = vpack.c.b16 %v819, %v818
    %v1111 = vpack.c.b16 %v821, %v820
    %v1112 = vpack.c.b16 %v823, %v822
    %v1113 = vpack.c.b16 %v825, %v824
    %v1114 = vpack.c.b16 %v827, %v826
    %v1115 = vpack.c.b16 %v829, %v828
    %v1116 = vpack.c.b16 %v831, %v830
    %v1117 = vpack.c.b16 %v833, %v832
    %v1118 = vpack.c.b16 %v835, %v834
    %v1119 = vpack.c.b16 %v837, %v836
    %v1120 = vpack.c.b16 %v839, %v838
    %v1121 = vpack.c.b16 %v841, %v840
    %v1122 = vpack.c.b16 %v843, %v842
    %v1123 = vpack.c.b16 %v845, %v844
    %v1124 = vpack.c.b16 %v847, %v846
    %v1125 = vpack.c.b16 %v849, %v848
    %v1126 = vpack.c.b16 %v851, %v850
    %v1127 = vpack.c.b16 %v853, %v852
    %v1128 = vpack.c.b16 %v855, %v854
    %v1129 = vpack.c.b16 %v857, %v856
    %v1130 = vpack.c.b16 %v859, %v858
    %v1131 = vpack.c.b16 %v861, %v860
    %v1132 = vpack.c.b16 %v863, %v862
    %v1133 = vpack.c.b16 %v865, %v864
    %v1134 = vpack.c.b16 %v867, %v866
    %v1135 = vpack.c.b16 %v869, %v868
    %v1136 = vpack.c.b16 %v871, %v870
    %v1137 = vpack.c.b16 %v873, %v872
    %v1138 = vpack.c.b16 %v875, %v874
    %v1139 = vpack.c.b16 %v877, %v876
    %v1140 = vpack.c.b16 %v879, %v878
    %v1141 = vpack.c.b16 %v881, %v880
    %v1142 = vpack.c.b16 %v883, %v882
    %v1143 = vpack.c.b16 %v885, %v884
    %v1144 = vpack.c.b16 %v887, %v886
    %v1145 = vpack.c.b16 %v889, %v888
    %v1146 = vpack.c.b16 %v891, %v890
    %v1147 = vpack.c.b16 %v893, %v892
    %v1148 = vpack.c.b16 %v895, %v894
    %v1149 = vpack.c.b16 %v897, %v896
    %v1150 = vpack.c.b16 %v899, %v898
    %v1151 = vpack.c.b16 %v901, %v900
    %v1152 = vpack.c.b16 %v903, %v902
    %v1153 = vpack.c.b16 %v905, %v904
    %v1154 = vpack.c.b16 %v907, %v906
    %v1155 = vpack.c.b16 %v909, %v908
    %v1156 = vpack.c.b16 %v911, %v910
    %v1157 = vpack.c.b16 %v913, %v912
    %v1158 = vpack.c.b16 %v915, %v914
    %v1159 = vpack.c.b16 %v917, %v916
    %v1160 = vpack.c.b16 %v919, %v918
    %v1161 = vpack.c.b16 %v921, %v920
    %v1162 = vpack.c.b16 %v923, %v922
    %v1163 = vpack.c.b16 %v925, %v924
    %v1164 = vpack.c.b16 %v927, %v926
    %v1165 = vpack.c.b16 %v929, %v928
    %v1166 = vpack.c.b16 %v931, %v930
    %v1167 = vpack.c.b16 %v933, %v932
    %v1168 = vpack.c.b16 %v935, %v934
    %v1169 = vpack.c.b16 %v937, %v936
    %v1170 = vpack.c.b16 %v939, %v938
    %v1171 = vpack.c.b16 %v941, %v940
    %v1172 = vpack.c.b16 %v943, %v942
    %v1173 = vpack.c.b16 %v945, %v944
    %v1174 = vpack.c.b16 %v947, %v946
    %v1175 = vpack.c.b16 %v949, %v948
    %v1176 = vpack.c.b16 %v951, %v950
    %v1177 = vpack.c.b16 %v953, %v952
    %v1178 = vpack.c.b16 %v955, %v954
    %v1179 = vpack.c.b16 %v957, %v956
    %v1180 = vpack.c.b16 %v959, %v958
    %v1181 = vpack.c.b16 %v961, %v960
    %v1182 = vpack.c.b16 %v963, %v962
    %v1183 = vpack.c.b16 %v965, %v964
    %v1184 = vpack.c.b16 %v967, %v966
    %v1185 = vpack.c.b16 %v969, %v968
    %v1186 = vpack.c.b16 %v971, %v970
    %v1187 = vpack.c.b16 %v973, %v972
    %v1188 = vpack.c.b16 %v975, %v974
    %v1189 = vpack.c.b16 %v977, %v976
    %v1190 = vpack.c.b16 %v979, %v978
    %v1191 = vpack.c.b16 %v981, %v980
    %v1192 = vpack.c.b16 %v983, %v982
    %v1193 = vpack.c.b16 %v985, %v984
    %v1194 = vpack.c.b16 %v987, %v986
    %v1195 = vpack.c.b16 %v989, %v988
    %v1196 = vpack.c.b16 %v991, %v990
    %v1197 = vpack.c.b16 %v993, %v992
    %v1198 = vpack.c.b16 %v995, %v994
    %v1199 = vpack.c.b16 %v997, %v996
    %v1200 = vpack.c.b16 %v999, %v998
    %v1201 = vpack.c.b16 %v1001, %v1000
    %v1202 = vpack.c.b16 %v1003, %v1002
    %v1203 = vpack.c.b16 %v1005, %v1004
    %v1204 = vpack.c.b16 %v1007, %v1006
    %v1205 = vpack.c.b16 %v1009, %v1008
    %v1206 = vpack.c.b16 %v1011, %v1010
    %v1207 = vpack.c.b16 %v1013, %v1012
    %v1208 = vpack.c.b16 %v1015, %v1014
    %v1209 = vpack.c.b16 %v1017, %v1016
    %v1210 = vpack.c.b16 %v1019, %v1018
    %v1211 = vpack.c.b16 %v1021, %v1020
    %v1212 = vpack.c.b16 %v1023, %v1022
    %v1213 = vpack.c.b16 %v1025, %v1024
    %v1214 = vpack.c.b16 %v1027, %v1026
    %v1215 = vpack.c.b16 %v1029, %v1028
    %v1216 = vpack.c.b16 %v1031, %v1030
    %v1217 = vpack.c.b16 %v1033, %v1032
    %v1218 = vpack.c.b16 %v1035, %v1034
    %v1219 = vpack.c.b16 %v1037, %v1036
    %v1220 = vpack.c.b16 %v1039, %v1038
    %v1221 = vpack.c.b16 %v1041, %v1040
    %v1222 = vpack.c.b16 %v1043, %v1042
    %v1223 = vpack.c.b16 %v1045, %v1044
    %v1224 = vpack.c.b16 %v1047, %v1046
    %v1225 = vpack.c.b16 %v1049, %v1048
    %v1226 = vpack.c.b16 %v1051, %v1050
    %v1227 = vpack.c.b16 %v1053, %v1052
    %v1228 = vpack.c.b16 %v1055, %v1054
    %v1229 = vpack.c.b16 %v1057, %v1056
    %v1230 = vpack.c.b16 %v1059, %v1058
    %v1231 = vpack.c.b16 %v1061, %v1060
    %v1232 = vpack.c.b16 %v1063, %v1062
    %v1233 = vpack.c.b16 %v1065, %v1064
    %v1234 = vpack.c.b16 %v1067, %v1066
    %v1235 = vpack.c.b16 %v1069, %v1068
    %v1236 = vpack.c.b16 %v1071, %v1070
    %v1237 = vpack.c.b16 %v1073, %v1072
    %v1238 = vpack.c.b16 %v1075, %v1074
    %v1239 = vpack.c.b16 %v1077, %v1076
    %v1240 = vpack.c.b16 %v1079, %v1078
    %v1241 = vpack.c.b16 %v1081, %v1080
    %1402 = vmatprep.subr.bf16.mxu0 0
    %1403 = vmatpush1.bf16.msra.mxu0 %v1089
    %1404 = vmatprep.subr.bf16.mxu0 0
    %1405 = vmatpush1.bf16.msra.mxu0 %v1088
    %1406 = vmatprep.subr.bf16.mxu0 0
    %1407 = vmatpush1.bf16.msra.mxu0 %v1087
    %1408 = vmatprep.subr.bf16.mxu0 0
    %1409 = vmatpush1.bf16.msra.mxu0 %v1086
    %1410 = vmatprep.subr.bf16.mxu0 0
    %1411 = vmatpush1.bf16.msra.mxu0 %v1085
    %1412 = vmatprep.subr.bf16.mxu0 0
    %1413 = vmatpush1.bf16.msra.mxu0 %v1084
    %1414 = vmatprep.subr.bf16.mxu0 0
    %1415 = vmatpush1.bf16.msra.mxu0 %v1083
    %1416 = vmatprep.subr.bf16.mxu0 0
    %1417 = vmatpush1.bf16.msra.mxu0 %v1082
    %1418 = vmatprep.subr.bf16.mxu0 0
    %1419 = vmatpush2.bf16.msra.mxu0 %v1097
    %1420 = vmatprep.subr.bf16.mxu0 0
    %1421 = vmatpush2.bf16.msra.mxu0 %v1096
    %1422 = vmatprep.subr.bf16.mxu0 0
    %1423 = vmatpush2.bf16.msra.mxu0 %v1095
    %1424 = vmatprep.subr.bf16.mxu0 0
    %1425 = vmatpush2.bf16.msra.mxu0 %v1094
    %1426 = vmatprep.subr.bf16.mxu0 0
    %1427 = vmatpush2.bf16.msra.mxu0 %v1093
    %1428 = vmatprep.subr.bf16.mxu0 0
    %1429 = vmatpush2.bf16.msra.mxu0 %v1092
    %1430 = vmatprep.subr.bf16.mxu0 0
    %1431 = vmatpush2.bf16.msra.mxu0 %v1091
    %1432 = vmatprep.subr.bf16.mxu0 0
    %1433 = vmatpush2.bf16.msra.mxu0 %v1090
    %1434 = vmatprep.mubr.bf16.mxu0 %v403
    %1435 = vmatmul.mubr.bf16.gmra.mxu0 %v402
    %v1436 = vpop.f32.mrf.mxu0
    %v1437 = vadd.f32 %v370, %v1436
    %v1438 = vpop.f32.mrf.mxu0
    %v1439 = vpop.f32.mrf.mxu0
    %v1440 = vpop.f32.mrf.mxu0
    %1441 = vdwg.mxu0
    %1442 = vmatprep.subr.bf16.mxu0 0
    %1443 = vmatpush1.bf16.msra.mxu0 %v1105
    %1444 = vmatprep.subr.bf16.mxu0 0
    %1445 = vmatpush1.bf16.msra.mxu0 %v1104
    %1446 = vmatprep.subr.bf16.mxu0 0
    %1447 = vmatpush1.bf16.msra.mxu0 %v1103
    %1448 = vmatprep.subr.bf16.mxu0 0
    %1449 = vmatpush1.bf16.msra.mxu0 %v1102
    %1450 = vmatprep.subr.bf16.mxu0 0
    %1451 = vmatpush1.bf16.msra.mxu0 %v1101
    %1452 = vmatprep.subr.bf16.mxu0 0
    %1453 = vmatpush1.bf16.msra.mxu0 %v1100
    %1454 = vmatprep.subr.bf16.mxu0 0
    %1455 = vmatpush1.bf16.msra.mxu0 %v1099
    %1456 = vmatprep.subr.bf16.mxu0 0
    %1457 = vmatpush1.bf16.msra.mxu0 %v1098
    %1458 = vmatprep.subr.bf16.mxu0 0
    %1459 = vmatpush2.bf16.msra.mxu0 %v1113
    %1460 = vmatprep.subr.bf16.mxu0 0
    %1461 = vmatpush2.bf16.msra.mxu0 %v1112
    %1462 = vmatprep.subr.bf16.mxu0 0
    %1463 = vmatpush2.bf16.msra.mxu0 %v1111
    %1464 = vmatprep.subr.bf16.mxu0 0
    %1465 = vmatpush2.bf16.msra.mxu0 %v1110
    %1466 = vmatprep.subr.bf16.mxu0 0
    %1467 = vmatpush2.bf16.msra.mxu0 %v1109
    %1468 = vmatprep.subr.bf16.mxu0 0
    %1469 = vmatpush2.bf16.msra.mxu0 %v1108
    %1470 = vmatprep.subr.bf16.mxu0 0
    %1471 = vmatpush2.bf16.msra.mxu0 %v1107
    %1472 = vmatprep.subr.bf16.mxu0 0
    %1473 = vmatpush2.bf16.msra.mxu0 %v1106
    %1474 = vmatprep.mubr.bf16.mxu0 %v405
    %1475 = vmatmul.mubr.bf16.gmra.mxu0 %v404
    %v1476 = vpop.f32.mrf.mxu0
    %v1477 = vadd.f32 %v1437, %v1476
    %v1478 = vpop.f32.mrf.mxu0
    %v1479 = vpop.f32.mrf.mxu0
    %v1480 = vpop.f32.mrf.mxu0
    %1481 = vdwg.mxu0
    %1482 = vmatprep.subr.bf16.mxu0 0
    %1483 = vmatpush1.bf16.msra.mxu0 %v1121
    %1484 = vmatprep.subr.bf16.mxu0 0
    %1485 = vmatpush1.bf16.msra.mxu0 %v1120
    %1486 = vmatprep.subr.bf16.mxu0 0
    %1487 = vmatpush1.bf16.msra.mxu0 %v1119
    %1488 = vmatprep.subr.bf16.mxu0 0
    %1489 = vmatpush1.bf16.msra.mxu0 %v1118
    %1490 = vmatprep.subr.bf16.mxu0 0
    %1491 = vmatpush1.bf16.msra.mxu0 %v1117
    %1492 = vmatprep.subr.bf16.mxu0 0
    %1493 = vmatpush1.bf16.msra.mxu0 %v1116
    %1494 = vmatprep.subr.bf16.mxu0 0
    %1495 = vmatpush1.bf16.msra.mxu0 %v1115
    %1496 = vmatprep.subr.bf16.mxu0 0
    %1497 = vmatpush1.bf16.msra.mxu0 %v1114
    %1498 = vmatprep.subr.bf16.mxu0 0
    %1499 = vmatpush2.bf16.msra.mxu0 %v1129
    %1500 = vmatprep.subr.bf16.mxu0 0
    %1501 = vmatpush2.bf16.msra.mxu0 %v1128
    %1502 = vmatprep.subr.bf16.mxu0 0
    %1503 = vmatpush2.bf16.msra.mxu0 %v1127
    %1504 = vmatprep.subr.bf16.mxu0 0
    %1505 = vmatpush2.bf16.msra.mxu0 %v1126
    %1506 = vmatprep.subr.bf16.mxu0 0
    %1507 = vmatpush2.bf16.msra.mxu0 %v1125
    %1508 = vmatprep.subr.bf16.mxu0 0
    %1509 = vmatpush2.bf16.msra.mxu0 %v1124
    %1510 = vmatprep.subr.bf16.mxu0 0
    %1511 = vmatpush2.bf16.msra.mxu0 %v1123
    %1512 = vmatprep.subr.bf16.mxu0 0
    %1513 = vmatpush2.bf16.msra.mxu0 %v1122
    %1514 = vmatprep.mubr.bf16.mxu0 %v407
    %1515 = vmatmul.mubr.bf16.gmra.mxu0 %v406
    %v1516 = vpop.f32.mrf.mxu0
    %v1517 = vadd.f32 %v1477, %v1516
    %v1518 = vpop.f32.mrf.mxu0
    %v1519 = vpop.f32.mrf.mxu0
    %v1520 = vpop.f32.mrf.mxu0
    %1521 = vdwg.mxu0
    %1522 = vmatprep.subr.bf16.mxu0 0
    %1523 = vmatpush1.bf16.msra.mxu0 %v1137
    %1524 = vmatprep.subr.bf16.mxu0 0
    %1525 = vmatpush1.bf16.msra.mxu0 %v1136
    %1526 = vmatprep.subr.bf16.mxu0 0
    %1527 = vmatpush1.bf16.msra.mxu0 %v1135
    %1528 = vmatprep.subr.bf16.mxu0 0
    %1529 = vmatpush1.bf16.msra.mxu0 %v1134
    %1530 = vmatprep.subr.bf16.mxu0 0
    %1531 = vmatpush1.bf16.msra.mxu0 %v1133
    %1532 = vmatprep.subr.bf16.mxu0 0
    %1533 = vmatpush1.bf16.msra.mxu0 %v1132
    %1534 = vmatprep.subr.bf16.mxu0 0
    %1535 = vmatpush1.bf16.msra.mxu0 %v1131
    %1536 = vmatprep.subr.bf16.mxu0 0
    %1537 = vmatpush1.bf16.msra.mxu0 %v1130
    %1538 = vmatprep.subr.bf16.mxu0 0
    %1539 = vmatpush2.bf16.msra.mxu0 %v1145
    %1540 = vmatprep.subr.bf16.mxu0 0
    %1541 = vmatpush2.bf16.msra.mxu0 %v1144
    %1542 = vmatprep.subr.bf16.mxu0 0
    %1543 = vmatpush2.bf16.msra.mxu0 %v1143
    %1544 = vmatprep.subr.bf16.mxu0 0
    %1545 = vmatpush2.bf16.msra.mxu0 %v1142
    %1546 = vmatprep.subr.bf16.mxu0 0
    %1547 = vmatpush2.bf16.msra.mxu0 %v1141
    %1548 = vmatprep.subr.bf16.mxu0 0
    %1549 = vmatpush2.bf16.msra.mxu0 %v1140
    %1550 = vmatprep.subr.bf16.mxu0 0
    %1551 = vmatpush2.bf16.msra.mxu0 %v1139
    %1552 = vmatprep.subr.bf16.mxu0 0
    %1553 = vmatpush2.bf16.msra.mxu0 %v1138
    %1554 = vmatprep.mubr.bf16.mxu0 %v409
    %1555 = vmatmul.mubr.bf16.gmra.mxu0 %v408
    %v1556 = vpop.f32.mrf.mxu0
    %v1557 = vadd.f32 %v1517, %v1556
    %v1558 = vpop.f32.mrf.mxu0
    %v1559 = vpop.f32.mrf.mxu0
    %v1560 = vpop.f32.mrf.mxu0
    %1561 = vdwg.mxu0
    %1562 = vmatprep.subr.bf16.mxu0 0
    %1563 = vmatpush1.bf16.msra.mxu0 %v1153
    %1564 = vmatprep.subr.bf16.mxu0 0
    %1565 = vmatpush1.bf16.msra.mxu0 %v1152
    %1566 = vmatprep.subr.bf16.mxu0 0
    %1567 = vmatpush1.bf16.msra.mxu0 %v1151
    %1568 = vmatprep.subr.bf16.mxu0 0
    %1569 = vmatpush1.bf16.msra.mxu0 %v1150
    %1570 = vmatprep.subr.bf16.mxu0 0
    %1571 = vmatpush1.bf16.msra.mxu0 %v1149
    %1572 = vmatprep.subr.bf16.mxu0 0
    %1573 = vmatpush1.bf16.msra.mxu0 %v1148
    %1574 = vmatprep.subr.bf16.mxu0 0
    %1575 = vmatpush1.bf16.msra.mxu0 %v1147
    %1576 = vmatprep.subr.bf16.mxu0 0
    %1577 = vmatpush1.bf16.msra.mxu0 %v1146
    %1578 = vmatprep.subr.bf16.mxu0 0
    %1579 = vmatpush2.bf16.msra.mxu0 %v1161
    %1580 = vmatprep.subr.bf16.mxu0 0
    %1581 = vmatpush2.bf16.msra.mxu0 %v1160
    %1582 = vmatprep.subr.bf16.mxu0 0
    %1583 = vmatpush2.bf16.msra.mxu0 %v1159
    %1584 = vmatprep.subr.bf16.mxu0 0
    %1585 = vmatpush2.bf16.msra.mxu0 %v1158
    %1586 = vmatprep.subr.bf16.mxu0 0
    %1587 = vmatpush2.bf16.msra.mxu0 %v1157
    %1588 = vmatprep.subr.bf16.mxu0 0
    %1589 = vmatpush2.bf16.msra.mxu0 %v1156
    %1590 = vmatprep.subr.bf16.mxu0 0
    %1591 = vmatpush2.bf16.msra.mxu0 %v1155
    %1592 = vmatprep.subr.bf16.mxu0 0
    %1593 = vmatpush2.bf16.msra.mxu0 %v1154
    %1594 = vmatprep.mubr.bf16.mxu0 %v411
    %1595 = vmatmul.mubr.bf16.gmra.mxu0 %v410
    %v1596 = vpop.f32.mrf.mxu0
    %v1597 = vadd.f32 %v1557, %v1596
    %v1598 = vpop.f32.mrf.mxu0
    %v1599 = vpop.f32.mrf.mxu0
    %v1600 = vpop.f32.mrf.mxu0
    %1601 = vdwg.mxu0
    %1602 = vmatprep.subr.bf16.mxu0 0
    %1603 = vmatpush1.bf16.msra.mxu0 %v1169
    %1604 = vmatprep.subr.bf16.mxu0 0
    %1605 = vmatpush1.bf16.msra.mxu0 %v1168
    %1606 = vmatprep.subr.bf16.mxu0 0
    %1607 = vmatpush1.bf16.msra.mxu0 %v1167
    %1608 = vmatprep.subr.bf16.mxu0 0
    %1609 = vmatpush1.bf16.msra.mxu0 %v1166
    %1610 = vmatprep.subr.bf16.mxu0 0
    %1611 = vmatpush1.bf16.msra.mxu0 %v1165
    %1612 = vmatprep.subr.bf16.mxu0 0
    %1613 = vmatpush1.bf16.msra.mxu0 %v1164
    %1614 = vmatprep.subr.bf16.mxu0 0
    %1615 = vmatpush1.bf16.msra.mxu0 %v1163
    %1616 = vmatprep.subr.bf16.mxu0 0
    %1617 = vmatpush1.bf16.msra.mxu0 %v1162
    %1618 = vmatprep.subr.bf16.mxu0 0
    %1619 = vmatpush2.bf16.msra.mxu0 %v1177
    %1620 = vmatprep.subr.bf16.mxu0 0
    %1621 = vmatpush2.bf16.msra.mxu0 %v1176
    %1622 = vmatprep.subr.bf16.mxu0 0
    %1623 = vmatpush2.bf16.msra.mxu0 %v1175
    %1624 = vmatprep.subr.bf16.mxu0 0
    %1625 = vmatpush2.bf16.msra.mxu0 %v1174
    %1626 = vmatprep.subr.bf16.mxu0 0
    %1627 = vmatpush2.bf16.msra.mxu0 %v1173
    %1628 = vmatprep.subr.bf16.mxu0 0
    %1629 = vmatpush2.bf16.msra.mxu0 %v1172
    %1630 = vmatprep.subr.bf16.mxu0 0
    %1631 = vmatpush2.bf16.msra.mxu0 %v1171
    %1632 = vmatprep.subr.bf16.mxu0 0
    %1633 = vmatpush2.bf16.msra.mxu0 %v1170
    %1634 = vmatprep.mubr.bf16.mxu0 %v413
    %1635 = vmatmul.mubr.bf16.gmra.mxu0 %v412
    %v1636 = vpop.f32.mrf.mxu0
    %v1637 = vadd.f32 %v1597, %v1636
    %v1638 = vpop.f32.mrf.mxu0
    %v1639 = vpop.f32.mrf.mxu0
    %v1640 = vpop.f32.mrf.mxu0
    %1641 = vdwg.mxu0
    %1642 = vmatprep.subr.bf16.mxu0 0
    %1643 = vmatpush1.bf16.msra.mxu0 %v1185
    %1644 = vmatprep.subr.bf16.mxu0 0
    %1645 = vmatpush1.bf16.msra.mxu0 %v1184
    %1646 = vmatprep.subr.bf16.mxu0 0
    %1647 = vmatpush1.bf16.msra.mxu0 %v1183
    %1648 = vmatprep.subr.bf16.mxu0 0
    %1649 = vmatpush1.bf16.msra.mxu0 %v1182
    %1650 = vmatprep.subr.bf16.mxu0 0
    %1651 = vmatpush1.bf16.msra.mxu0 %v1181
    %1652 = vmatprep.subr.bf16.mxu0 0
    %1653 = vmatpush1.bf16.msra.mxu0 %v1180
    %1654 = vmatprep.subr.bf16.mxu0 0
    %1655 = vmatpush1.bf16.msra.mxu0 %v1179
    %1656 = vmatprep.subr.bf16.mxu0 0
    %1657 = vmatpush1.bf16.msra.mxu0 %v1178
    %1658 = vmatprep.subr.bf16.mxu0 0
    %1659 = vmatpush2.bf16.msra.mxu0 %v1193
    %1660 = vmatprep.subr.bf16.mxu0 0
    %1661 = vmatpush2.bf16.msra.mxu0 %v1192
    %1662 = vmatprep.subr.bf16.mxu0 0
    %1663 = vmatpush2.bf16.msra.mxu0 %v1191
    %1664 = vmatprep.subr.bf16.mxu0 0
    %1665 = vmatpush2.bf16.msra.mxu0 %v1190
    %1666 = vmatprep.subr.bf16.mxu0 0
    %1667 = vmatpush2.bf16.msra.mxu0 %v1189
    %1668 = vmatprep.subr.bf16.mxu0 0
    %1669 = vmatpush2.bf16.msra.mxu0 %v1188
    %1670 = vmatprep.subr.bf16.mxu0 0
    %1671 = vmatpush2.bf16.msra.mxu0 %v1187
    %1672 = vmatprep.subr.bf16.mxu0 0
    %1673 = vmatpush2.bf16.msra.mxu0 %v1186
    %1674 = vmatprep.mubr.bf16.mxu0 %v415
    %1675 = vmatmul.mubr.bf16.gmra.mxu0 %v414
    %v1676 = vpop.f32.mrf.mxu0
    %v1677 = vadd.f32 %v1637, %v1676
    %v1678 = vpop.f32.mrf.mxu0
    %v1679 = vpop.f32.mrf.mxu0
    %v1680 = vpop.f32.mrf.mxu0
    %1681 = vdwg.mxu0
    %1682 = vmatprep.subr.bf16.mxu0 0
    %1683 = vmatpush1.bf16.msra.mxu0 %v1201
    %1684 = vmatprep.subr.bf16.mxu0 0
    %1685 = vmatpush1.bf16.msra.mxu0 %v1200
    %1686 = vmatprep.subr.bf16.mxu0 0
    %1687 = vmatpush1.bf16.msra.mxu0 %v1199
    %1688 = vmatprep.subr.bf16.mxu0 0
    %1689 = vmatpush1.bf16.msra.mxu0 %v1198
    %1690 = vmatprep.subr.bf16.mxu0 0
    %1691 = vmatpush1.bf16.msra.mxu0 %v1197
    %1692 = vmatprep.subr.bf16.mxu0 0
    %1693 = vmatpush1.bf16.msra.mxu0 %v1196
    %1694 = vmatprep.subr.bf16.mxu0 0
    %1695 = vmatpush1.bf16.msra.mxu0 %v1195
    %1696 = vmatprep.subr.bf16.mxu0 0
    %1697 = vmatpush1.bf16.msra.mxu0 %v1194
    %1698 = vmatprep.subr.bf16.mxu0 0
    %1699 = vmatpush2.bf16.msra.mxu0 %v1209
    %1700 = vmatprep.subr.bf16.mxu0 0
    %1701 = vmatpush2.bf16.msra.mxu0 %v1208
    %1702 = vmatprep.subr.bf16.mxu0 0
    %1703 = vmatpush2.bf16.msra.mxu0 %v1207
    %1704 = vmatprep.subr.bf16.mxu0 0
    %1705 = vmatpush2.bf16.msra.mxu0 %v1206
    %1706 = vmatprep.subr.bf16.mxu0 0
    %1707 = vmatpush2.bf16.msra.mxu0 %v1205
    %1708 = vmatprep.subr.bf16.mxu0 0
    %1709 = vmatpush2.bf16.msra.mxu0 %v1204
    %1710 = vmatprep.subr.bf16.mxu0 0
    %1711 = vmatpush2.bf16.msra.mxu0 %v1203
    %1712 = vmatprep.subr.bf16.mxu0 0
    %1713 = vmatpush2.bf16.msra.mxu0 %v1202
    %1714 = vmatprep.mubr.bf16.mxu0 %v417
    %1715 = vmatmul.mubr.bf16.gmra.mxu0 %v416
    %v1716 = vpop.f32.mrf.mxu0
    %v1717 = vadd.f32 %v1677, %v1716
    %v1718 = vpop.f32.mrf.mxu0
    %v1719 = vpop.f32.mrf.mxu0
    %v1720 = vpop.f32.mrf.mxu0
    %1721 = vdwg.mxu0
    %1722 = vmatprep.subr.bf16.mxu0 0
    %1723 = vmatpush1.bf16.msra.mxu0 %v1217
    %1724 = vmatprep.subr.bf16.mxu0 0
    %1725 = vmatpush1.bf16.msra.mxu0 %v1216
    %1726 = vmatprep.subr.bf16.mxu0 0
    %1727 = vmatpush1.bf16.msra.mxu0 %v1215
    %1728 = vmatprep.subr.bf16.mxu0 0
    %1729 = vmatpush1.bf16.msra.mxu0 %v1214
    %1730 = vmatprep.subr.bf16.mxu0 0
    %1731 = vmatpush1.bf16.msra.mxu0 %v1213
    %1732 = vmatprep.subr.bf16.mxu0 0
    %1733 = vmatpush1.bf16.msra.mxu0 %v1212
    %1734 = vmatprep.subr.bf16.mxu0 0
    %1735 = vmatpush1.bf16.msra.mxu0 %v1211
    %1736 = vmatprep.subr.bf16.mxu0 0
    %1737 = vmatpush1.bf16.msra.mxu0 %v1210
    %1738 = vmatprep.subr.bf16.mxu0 0
    %1739 = vmatpush2.bf16.msra.mxu0 %v1225
    %1740 = vmatprep.subr.bf16.mxu0 0
    %1741 = vmatpush2.bf16.msra.mxu0 %v1224
    %1742 = vmatprep.subr.bf16.mxu0 0
    %1743 = vmatpush2.bf16.msra.mxu0 %v1223
    %1744 = vmatprep.subr.bf16.mxu0 0
    %1745 = vmatpush2.bf16.msra.mxu0 %v1222
    %1746 = vmatprep.subr.bf16.mxu0 0
    %1747 = vmatpush2.bf16.msra.mxu0 %v1221
    %1748 = vmatprep.subr.bf16.mxu0 0
    %1749 = vmatpush2.bf16.msra.mxu0 %v1220
    %1750 = vmatprep.subr.bf16.mxu0 0
    %1751 = vmatpush2.bf16.msra.mxu0 %v1219
    %1752 = vmatprep.subr.bf16.mxu0 0
    %1753 = vmatpush2.bf16.msra.mxu0 %v1218
    %1754 = vmatprep.mubr.bf16.mxu0 %v419
    %1755 = vmatmul.mubr.bf16.gmra.mxu0 %v418
    %v1756 = vpop.f32.mrf.mxu0
    %v1757 = vadd.f32 %v1717, %v1756
    %v1758 = vpop.f32.mrf.mxu0
    %v1759 = vpop.f32.mrf.mxu0
    %v1760 = vpop.f32.mrf.mxu0
    %1761 = vdwg.mxu0
    %1762 = vmatprep.subr.bf16.mxu0 0
    %1763 = vmatpush1.bf16.msra.mxu0 %v1233
    %1764 = vmatprep.subr.bf16.mxu0 0
    %1765 = vmatpush1.bf16.msra.mxu0 %v1232
    %1766 = vmatprep.subr.bf16.mxu0 0
    %1767 = vmatpush1.bf16.msra.mxu0 %v1231
    %1768 = vmatprep.subr.bf16.mxu0 0
    %1769 = vmatpush1.bf16.msra.mxu0 %v1230
    %1770 = vmatprep.subr.bf16.mxu0 0
    %1771 = vmatpush1.bf16.msra.mxu0 %v1229
    %1772 = vmatprep.subr.bf16.mxu0 0
    %1773 = vmatpush1.bf16.msra.mxu0 %v1228
    %1774 = vmatprep.subr.bf16.mxu0 0
    %1775 = vmatpush1.bf16.msra.mxu0 %v1227
    %1776 = vmatprep.subr.bf16.mxu0 0
    %1777 = vmatpush1.bf16.msra.mxu0 %v1226
    %1778 = vmatprep.subr.bf16.mxu0 0
    %1779 = vmatpush2.bf16.msra.mxu0 %v1241
    %1780 = vmatprep.subr.bf16.mxu0 0
    %1781 = vmatpush2.bf16.msra.mxu0 %v1240
    %1782 = vmatprep.subr.bf16.mxu0 0
    %1783 = vmatpush2.bf16.msra.mxu0 %v1239
    %1784 = vmatprep.subr.bf16.mxu0 0
    %1785 = vmatpush2.bf16.msra.mxu0 %v1238
    %1786 = vmatprep.subr.bf16.mxu0 0
    %1787 = vmatpush2.bf16.msra.mxu0 %v1237
    %1788 = vmatprep.subr.bf16.mxu0 0
    %1789 = vmatpush2.bf16.msra.mxu0 %v1236
    %1790 = vmatprep.subr.bf16.mxu0 0
    %1791 = vmatpush2.bf16.msra.mxu0 %v1235
    %1792 = vmatprep.subr.bf16.mxu0 0
    %1793 = vmatpush2.bf16.msra.mxu0 %v1234
    %1794 = vmatprep.mubr.bf16.mxu0 %v421
    %1795 = vmatmul.mubr.bf16.gmra.mxu0 %v420
    %v1796 = vpop.f32.mrf.mxu0
    %v1797 = vadd.f32 %v1757, %v1796
    %v1798 = vpop.f32.mrf.mxu0
    %v1799 = vpop.f32.mrf.mxu0
    %v1800 = vpop.f32.mrf.mxu0
    %1801 = vdwg.mxu0
    %v1802 = vmax.f32 %v1797, 0.0
    %v1803 = vpack.c.bf16 %v1802, %v1802
    %v1804 = vld [vmem:[%s3] sm:$0xf]
    %v1805 = vld [vmem:[%s3 + $0x4] sm:$0xf]
    %v1806 = vld [vmem:[%s3 + $0x8] sm:$0xf]
    %v1807 = vld [vmem:[%s3 + $0xc] sm:$0xf]
    %v1808 = vld [vmem:[%s3 + $0x10] sm:$0xf]
    %v1809 = vld [vmem:[%s3 + $0x14] sm:$0xf]
    %v1810 = vld [vmem:[%s3 + $0x18] sm:$0xf]
    %v1811 = vld [vmem:[%s3 + $0x1c] sm:$0xf]
    %v1812 = vld [vmem:[%s3 + $0x20] sm:$0xf]
    %v1813 = vld [vmem:[%s3 + $0x24] sm:$0xf]
    %v1814 = vld [vmem:[%s3 + $0x28] sm:$0xf]
    %v1815 = vld [vmem:[%s3 + $0x2c] sm:$0xf]
    %v1816 = vld [vmem:[%s3 + $0x30] sm:$0xf]
    %v1817 = vld [vmem:[%s3 + $0x34] sm:$0xf]
    %v1818 = vld [vmem:[%s3 + $0x38] sm:$0xf]
    %v1819 = vld [vmem:[%s3 + $0x3c] sm:$0xf]
    %v1820 = vld [vmem:[%s4] sm:$0x1]
    %v1822 = vlaneseq
    %v1823 = vshrl.u32 %v1822, 7
    %v1824 = vsub.s32 0, %v1823
    %v1825 = vrot.slane %v1820, %v1824
    %v1843 = vunpack.c.l.b16 %v1804
    %v1844 = vunpack.c.l.b16 %v1805
    %v1845 = vunpack.c.l.b16 %v1806
    %v1846 = vunpack.c.l.b16 %v1807
    %v1847 = vunpack.c.l.b16 %v1808
    %v1848 = vunpack.c.l.b16 %v1809
    %v1849 = vunpack.c.l.b16 %v1810
    %v1850 = vunpack.c.l.b16 %v1811
    %v1851 = vunpack.c.l.b16 %v1812
    %v1852 = vunpack.c.l.b16 %v1813
    %v1853 = vunpack.c.l.b16 %v1814
    %v1854 = vunpack.c.l.b16 %v1815
    %v1855 = vunpack.c.l.b16 %v1816
    %v1856 = vunpack.c.l.b16 %v1817
    %v1857 = vunpack.c.l.b16 %v1818
    %v1858 = vunpack.c.l.b16 %v1819
    %v1859 = vpack.c.b16 %v1844, %v1843
    %v1860 = vpack.c.b16 %v1846, %v1845
    %v1861 = vpack.c.b16 %v1848, %v1847
    %v1862 = vpack.c.b16 %v1850, %v1849
    %v1863 = vpack.c.b16 %v1852, %v1851
    %v1864 = vpack.c.b16 %v1854, %v1853
    %v1865 = vpack.c.b16 %v1856, %v1855
    %v1866 = vpack.c.b16 %v1858, %v1857
    %1875 = vmatprep.subr.bf16.mxu0 0
    %1876 = vmatpush1.bf16.msra.mxu0 %v1866
    %1877 = vmatprep.subr.bf16.mxu0 0
    %1878 = vmatpush1.bf16.msra.mxu0 %v1865
    %1879 = vmatprep.subr.bf16.mxu0 0
    %1880 = vmatpush1.bf16.msra.mxu0 %v1864
    %1881 = vmatprep.subr.bf16.mxu0 0
    %1882 = vmatpush1.bf16.msra.mxu0 %v1863
    %1883 = vmatprep.subr.bf16.mxu0 0
    %1884 = vmatpush1.bf16.msra.mxu0 %v1862
    %1885 = vmatprep.subr.bf16.mxu0 0
    %1886 = vmatpush1.bf16.msra.mxu0 %v1861
    %1887 = vmatprep.subr.bf16.mxu0 0
    %1888 = vmatpush1.bf16.msra.mxu0 %v1860
    %1889 = vmatprep.subr.bf16.mxu0 0
    %1890 = vmatpush1.bf16.msra.mxu0 %v1859
    %1891 = vmatprep.subr.bf16.mxu0 0
    %1892 = vmatpush2.bf16.msra.mxu0 0
    %1893 = vmatprep.subr.bf16.mxu0 0
    %1894 = vmatpush2.bf16.msra.mxu0 0
    %1895 = vmatprep.subr.bf16.mxu0 0
    %1896 = vmatpush2.bf16.msra.mxu0 0
    %1897 = vmatprep.subr.bf16.mxu0 0
    %1898 = vmatpush2.bf16.msra.mxu0 0
    %1899 = vmatprep.subr.bf16.mxu0 0
    %1900 = vmatpush2.bf16.msra.mxu0 0
    %1901 = vmatprep.subr.bf16.mxu0 0
    %1902 = vmatpush2.bf16.msra.mxu0 0
    %1903 = vmatprep.subr.bf16.mxu0 0
    %1904 = vmatpush2.bf16.msra.mxu0 0
    %1905 = vmatprep.subr.bf16.mxu0 0
    %1906 = vmatpush2.bf16.msra.mxu0 0
    %1907 = vmatprep.mubr.bf16.mxu0 0
    %1908 = vmatmul.mubr.bf16.gmra.mxu0 %v1803
    %v1909 = vpop.f32.mrf.mxu0
    %v1910 = vadd.f32 %v1825, %v1909
    %v1911 = vpop.f32.mrf.mxu0
    %v1912 = vpop.f32.mrf.mxu0
    %v1913 = vpop.f32.mrf.mxu0
    %1914 = vdwg.mxu0
    %1915 = vst [vmem:[%s5] sm:$0xff] %v1910
    // Predicated region
    $region26: #{_dual_head_forward.1} parent=1 // pred_check
      _
    $region27: #{_dual_head_forward.1} parent=1 // pred_check_branch
      %1917 = sbr.rel (0) target = $region29
    $region28: #{_dual_head_forward.1} parent=1 // pred_region
      _
    $region29: #{_dual_head_forward.1} parent=1 // pred_fallthru
      _
    // Predicated region
    $region30: #{_dual_head_forward.1} parent=1 // pred_check
      _
    $region31: #{_dual_head_forward.1} parent=1 // pred_check_branch
      %1919 = sbr.rel (0) target = $region33
    $region32: #{_dual_head_forward.1} parent=1 // pred_region
      _
    $region33: #{_dual_head_forward.1} parent=1 // pred_fallthru
      _
    %1920 = vsyncpa [#allocation3], 1

</llo_original>
